<compile_context>
chip_gen: v5e
topology: v5e:2x2
jax: 0.10.0
libtpu: 0.0.40
codegen_flags: <defaults>
</compile_context>

<pallas_src>
import functools

import jax
import jax.numpy as jnp
import numpy as np
from jax.experimental import pallas as pl
from jax.experimental.pallas import tpu as pltpu

_MAX_TILE_M = 512  # rows per grid step (multiple of 8; full rows when small)


def _round_up(x, m):
    return (x + m - 1) // m * m


def _silu(x):
    return x * jax.nn.sigmoid(x)


# ------------------------------ fused kernel -------------------------------

def _topdown_kernel(z_ref, h_ref, ze_ref, eps_ref, *rest):
    # rest = 40 weight/bias refs followed by 2 output refs.
    (q1z, q1h, q1c, q1b,
     q2x, q2c, q2b,
     q3xm, q3cm, q3bm,
     q3xl, q3cl, q3bl,
     p1x, p1c, p1b,
     p2x, p2c, p2b,
     p3xr, p3cr, p3br,
     p3xm, p3cm, p3bm,
     p3xl, p3cl, p3bl,
     fzx, fzc, fzb,
     o1x, o1c, o1b,
     o2x, o2c, o2b,
     o3x, o3c, o3b) = rest[:-2]
    z_out_ref, kl_ref = rest[-2:]

    z = z_ref[...]
    h = h_ref[...]
    c = ze_ref[...]

    def dot(a, w_ref):
        return jnp.dot(a, w_ref[...], preferred_element_type=jnp.float32)

    # q_block = Block(z_dim + h_dim, ze_dim, hid, 2*z_dim, residual=False)
    # CLinear([z, h], ze): concat removed by splitting the fc1 weight.
    q = _silu(dot(z, q1z) + dot(h, q1h) + dot(c, q1c) + q1b[...])
    q = _silu(dot(q, q2x) + dot(c, q2c) + q2b[...])
    q_mu = _silu(dot(q, q3xm) + dot(c, q3cm) + q3bm[...])
    q_logvar = _silu(dot(q, q3xl) + dot(c, q3cl) + q3bl[...])

    # p_block = Block(z_dim, ze_dim, hid, 3*z_dim, residual=False)
    p = _silu(dot(z, p1x) + dot(c, p1c) + p1b[...])
    p = _silu(dot(p, p2x) + dot(c, p2c) + p2b[...])
    z_residual = _silu(dot(p, p3xr) + dot(c, p3cr) + p3br[...])
    p_mu = _silu(dot(p, p3xm) + dot(c, p3cm) + p3bm[...])
    p_logvar = _silu(dot(p, p3xl) + dot(c, p3cl) + p3bl[...])

    # z_sample = reparametrization(q_mu, q_logvar); then fc_z (CLinear).
    # TODO(synk): reparametrization() is not defined in the provided source;
    # the standard mu + exp(0.5*logvar)*eps form with external N(0,1) noise is used.
    z_sample = q_mu + jnp.exp(0.5 * q_logvar) * eps_ref[...]
    z_sample = dot(z_sample, fzx) + dot(c, fzc) + fzb[...]

    zn = z + z_residual + z_sample

    # out_block = Block(z_dim, ze_dim, hid, z_dim, residual=True)
    o = _silu(dot(zn, o1x) + dot(c, o1c) + o1b[...])
    o = _silu(dot(o, o2x) + dot(c, o2c) + o2b[...])
    o = _silu(dot(o, o3x) + dot(c, o3c) + o3b[...])
    z_out_ref[...] = o + zn

    # TODO(synk): analytical_kl() is not defined in the provided source; the
    # standard diagonal-Gaussian KL(q||p) per-element formula is used.
    kl_ref[...] = 0.5 * (p_logvar - q_logvar
                         + (jnp.exp(q_logvar) + (q_mu - p_mu) ** 2)
                         * jnp.exp(-p_logvar)
                         - 1.0)


# ------------------------------- parameters --------------------------------

def _init_clinear(key, in_dims, out_dim):
    """CLinear(sum(in_dims) -> out_dim) == nn.Linear on the concatenated input;
    the weight is stored pre-split per input chunk (so no concat in-kernel)."""
    fan_in = sum(in_dims)
    bound = 1.0 / float(np.sqrt(fan_in))
    kw, kb = jax.random.split(key)
    w = jax.random.uniform(kw, (fan_in, out_dim), jnp.float32, -bound, bound)
    b = jax.random.uniform(kb, (1, out_dim), jnp.float32, -bound, bound)
    ws, off = [], 0
    for d in in_dims:
        ws.append(w[off:off + d])
        off += d
    return {"ws": ws, "b": b}


def init_topdown(key, z_dim, h_dim, ze_dim, hid_dim):
    ks = jax.random.split(key, 10)
    return {
        "q_fc1": _init_clinear(ks[0], [z_dim, h_dim, ze_dim], hid_dim),
        "q_fc2": _init_clinear(ks[1], [hid_dim, ze_dim], hid_dim),
        "q_fc3": _init_clinear(ks[2], [hid_dim, ze_dim], 2 * z_dim),
        "p_fc1": _init_clinear(ks[3], [z_dim, ze_dim], hid_dim),
        "p_fc2": _init_clinear(ks[4], [hid_dim, ze_dim], hid_dim),
        "p_fc3": _init_clinear(ks[5], [hid_dim, ze_dim], 3 * z_dim),
        "fc_z": _init_clinear(ks[6], [z_dim, ze_dim], z_dim),
        "o_fc1": _init_clinear(ks[7], [z_dim, ze_dim], hid_dim),
        "o_fc2": _init_clinear(ks[8], [hid_dim, ze_dim], hid_dim),
        "o_fc3": _init_clinear(ks[9], [hid_dim, ze_dim], z_dim),
    }


def _head_split(p, n_heads):
    """Split a CLinear's output columns into contiguous heads so the kernel
    never lane-slices activations (e.g. mu/logvar of the 2*z_dim head)."""
    out = p["b"].shape[1] // n_heads
    heads = []
    for i in range(n_heads):
        sl = slice(i * out, (i + 1) * out)
        heads.append(([w[:, sl] for w in p["ws"]], p["b"][:, sl]))
    return heads


def _flatten_weights(params):
    w = []
    q1 = params["q_fc1"]; w += q1["ws"] + [q1["b"]]
    q2 = params["q_fc2"]; w += q2["ws"] + [q2["b"]]
    for ws, b in _head_split(params["q_fc3"], 2):      # q_mu | q_logvar
        w += ws + [b]
    p1 = params["p_fc1"]; w += p1["ws"] + [p1["b"]]
    p2 = params["p_fc2"]; w += p2["ws"] + [p2["b"]]
    for ws, b in _head_split(params["p_fc3"], 3):      # z_residual | p_mu | p_logvar
        w += ws + [b]
    fz = params["fc_z"]; w += fz["ws"] + [fz["b"]]
    for name in ("o_fc1", "o_fc2", "o_fc3"):
        pp = params[name]; w += pp["ws"] + [pp["b"]]
    return w


# ----------------------------- forward wrapper ------------------------------

def topdown_forward(params, z, h, ze, eps):
    rows, z_dim = z.shape
    tile = min(_MAX_TILE_M, _round_up(rows, 8))
    rows_p = _round_up(rows, tile)
    pad = rows_p - rows

    row_args = [z, h, ze, eps]
    if pad:  # single pad for the whole fused block (not per-layer)
        row_args = [jnp.pad(a, ((0, pad), (0, 0))) for a in row_args]
    weights = _flatten_weights(params)

    grid = (rows_p // tile,)
    in_specs = (
        [pl.BlockSpec((tile, a.shape[1]), lambda i: (i, 0)) for a in row_args]
        + [pl.BlockSpec(w.shape, lambda i: (0, 0)) for w in weights]  # resident
    )
    out_specs = [pl.BlockSpec((tile, z_dim), lambda i: (i, 0)),
                 pl.BlockSpec((tile, z_dim), lambda i: (i, 0))]
    out_shape = [jax.ShapeDtypeStruct((rows_p, z_dim), jnp.float32),
                 jax.ShapeDtypeStruct((rows_p, z_dim), jnp.float32)]

    z_out, kl = pl.pallas_call(
        _topdown_kernel,
        grid=grid,
        in_specs=in_specs,
        out_specs=out_specs,
        out_shape=out_shape,
        compiler_params=pltpu.CompilerParams(
            dimension_semantics=("parallel",)),  # row tiles shard across TCs on v7x
    )(*row_args, *weights)

    z_out = z_out[:rows]
    kl = kl[:rows]          # padded rows excluded from the KL reduction
    return z_out, jnp.sum(kl)


# ----------------------------- pure-JAX reference ---------------------------

def _clinear_ref(p, *xs):
    y = p["b"][0]
    for x, w in zip(xs, p["ws"]):
        y = y + jnp.dot(x, w, precision=jax.lax.Precision.HIGHEST)
    return y


def topdown_reference(params, z, h, ze, eps):
    silu = lambda t: t * jax.nn.sigmoid(t)
    z_dim = z.shape[-1]
    q = silu(_clinear_ref(params["q_fc1"], z, h, ze))
    q = silu(_clinear_ref(params["q_fc2"], q, ze))
    q = silu(_clinear_ref(params["q_fc3"], q, ze))
    q_mu, q_logvar = q[:, :z_dim], q[:, z_dim:]
    p = silu(_clinear_ref(params["p_fc1"], z, ze))
    p = silu(_clinear_ref(params["p_fc2"], p, ze))
    p = silu(_clinear_ref(params["p_fc3"], p, ze))
    z_res, p_mu, p_logvar = p[:, :z_dim], p[:, z_dim:2 * z_dim], p[:, 2 * z_dim:]
    z_sample = q_mu + jnp.exp(0.5 * q_logvar) * eps
    z_sample = _clinear_ref(params["fc_z"], z_sample, ze)
    zn = z + z_res + z_sample
    o = silu(_clinear_ref(params["o_fc1"], zn, ze))
    o = silu(_clinear_ref(params["o_fc2"], o, ze))
    o = silu(_clinear_ref(params["o_fc3"], o, ze))
    z_out = o + zn
    kl = 0.5 * (p_logvar - q_logvar
                + (jnp.exp(q_logvar) + (q_mu - p_mu) ** 2) * jnp.exp(-p_logvar)
                - 1.0)
    return z_out, jnp.sum(kl)


# ----------------------------------- main -----------------------------------

if __name__ == "__main__":
    z_dim, h_dim, ze_dim, hid_dim = 8, 32, 16, 32
    batch = 4

    key = jax.random.PRNGKey(0)
    kp, kz, kh, kze, keps = jax.random.split(key, 5)

    params = init_topdown(kp, z_dim, h_dim, ze_dim, hid_dim)
    z = jax.random.normal(kz, (batch, z_dim), jnp.float32)
    h = jax.random.normal(kh, (batch, h_dim), jnp.float32)
    ze = jax.random.normal(kze, (batch, ze_dim), jnp.float32)
    eps = jax.random.normal(keps, (batch, z_dim), jnp.float32)  # reparam noise

    fwd = jax.jit(topdown_forward)
    z_out, kl = fwd(params, z, h, ze, eps)
    jax.block_until_ready((z_out, kl))

    # correctness self-check against a pure-JAX reference
    z_ref, kl_ref = topdown_reference(params, z, h, ze, eps)
    assert z_out.shape == z.shape
    assert np.allclose(np.asarray(z_out), np.asarray(z_ref), rtol=1e-2, atol=1e-2)
    assert np.allclose(float(kl), float(kl_ref), rtol=1e-2, atol=1e-2)

    print("KERNEL_OK")
</pallas_src>

<mosaic_0001>
module attributes {stable_mosaic.version = 11 : i64} {
  func.func @_topdown_kernel(%arg0: i32, %arg1: memref<8x8xf32, #tpu.memory_space<vmem>>, %arg2: memref<8x32xf32, #tpu.memory_space<vmem>>, %arg3: memref<8x16xf32, #tpu.memory_space<vmem>>, %arg4: memref<8x8xf32, #tpu.memory_space<vmem>>, %arg5: memref<8x32xf32, #tpu.memory_space<vmem>>, %arg6: memref<32x32xf32, #tpu.memory_space<vmem>>, %arg7: memref<16x32xf32, #tpu.memory_space<vmem>>, %arg8: memref<1x32xf32, #tpu.memory_space<vmem>>, %arg9: memref<32x32xf32, #tpu.memory_space<vmem>>, %arg10: memref<16x32xf32, #tpu.memory_space<vmem>>, %arg11: memref<1x32xf32, #tpu.memory_space<vmem>>, %arg12: memref<32x8xf32, #tpu.memory_space<vmem>>, %arg13: memref<16x8xf32, #tpu.memory_space<vmem>>, %arg14: memref<1x8xf32, #tpu.memory_space<vmem>>, %arg15: memref<32x8xf32, #tpu.memory_space<vmem>>, %arg16: memref<16x8xf32, #tpu.memory_space<vmem>>, %arg17: memref<1x8xf32, #tpu.memory_space<vmem>>, %arg18: memref<8x32xf32, #tpu.memory_space<vmem>>, %arg19: memref<16x32xf32, #tpu.memory_space<vmem>>, %arg20: memref<1x32xf32, #tpu.memory_space<vmem>>, %arg21: memref<32x32xf32, #tpu.memory_space<vmem>>, %arg22: memref<16x32xf32, #tpu.memory_space<vmem>>, %arg23: memref<1x32xf32, #tpu.memory_space<vmem>>, %arg24: memref<32x8xf32, #tpu.memory_space<vmem>>, %arg25: memref<16x8xf32, #tpu.memory_space<vmem>>, %arg26: memref<1x8xf32, #tpu.memory_space<vmem>>, %arg27: memref<32x8xf32, #tpu.memory_space<vmem>>, %arg28: memref<16x8xf32, #tpu.memory_space<vmem>>, %arg29: memref<1x8xf32, #tpu.memory_space<vmem>>, %arg30: memref<32x8xf32, #tpu.memory_space<vmem>>, %arg31: memref<16x8xf32, #tpu.memory_space<vmem>>, %arg32: memref<1x8xf32, #tpu.memory_space<vmem>>, %arg33: memref<8x8xf32, #tpu.memory_space<vmem>>, %arg34: memref<16x8xf32, #tpu.memory_space<vmem>>, %arg35: memref<1x8xf32, #tpu.memory_space<vmem>>, %arg36: memref<8x32xf32, #tpu.memory_space<vmem>>, %arg37: memref<16x32xf32, #tpu.memory_space<vmem>>, %arg38: memref<1x32xf32, #tpu.memory_space<vmem>>, %arg39: memref<32x32xf32, #tpu.memory_space<vmem>>, %arg40: memref<16x32xf32, #tpu.memory_space<vmem>>, %arg41: memref<1x32xf32, #tpu.memory_space<vmem>>, %arg42: memref<32x8xf32, #tpu.memory_space<vmem>>, %arg43: memref<16x8xf32, #tpu.memory_space<vmem>>, %arg44: memref<1x8xf32, #tpu.memory_space<vmem>>, %arg45: memref<8x8xf32, #tpu.memory_space<vmem>>, %arg46: memref<8x8xf32, #tpu.memory_space<vmem>>) attributes {dimension_semantics = [#tpu.dimension_semantics<parallel>], iteration_bounds = array<i64: 1>, scalar_prefetch = 0 : i64, scratch_operands = 0 : i64, tpu.core_type = #tpu.core_type<tc>, window_params = [{transform_indices = @transform_0, window_bounds = array<i64: 8, 8>}, {transform_indices = @transform_1, window_bounds = array<i64: 8, 32>}, {transform_indices = @transform_2, window_bounds = array<i64: 8, 16>}, {transform_indices = @transform_3, window_bounds = array<i64: 8, 8>}, {pipeline_mode = #tpu.pipeline_mode<synchronous>, transform_indices = @transform_4, window_bounds = array<i64: 8, 32>}, {pipeline_mode = #tpu.pipeline_mode<synchronous>, transform_indices = @transform_5, window_bounds = array<i64: 32, 32>}, {pipeline_mode = #tpu.pipeline_mode<synchronous>, transform_indices = @transform_6, window_bounds = array<i64: 16, 32>}, {pipeline_mode = #tpu.pipeline_mode<synchronous>, transform_indices = @transform_7, window_bounds = array<i64: 1, 32>}, {pipeline_mode = #tpu.pipeline_mode<synchronous>, transform_indices = @transform_8, window_bounds = array<i64: 32, 32>}, {pipeline_mode = #tpu.pipeline_mode<synchronous>, transform_indices = @transform_9, window_bounds = array<i64: 16, 32>}, {pipeline_mode = #tpu.pipeline_mode<synchronous>, transform_indices = @transform_10, window_bounds = array<i64: 1, 32>}, {pipeline_mode = #tpu.pipeline_mode<synchronous>, transform_indices = @transform_11, window_bounds = array<i64: 32, 8>}, {pipeline_mode = #tpu.pipeline_mode<synchronous>, transform_indices = @transform_12, window_bounds = array<i64: 16, 8>}, {pipeline_mode = #tpu.pipeline_mode<synchronous>, transform_indices = @transform_13, window_bounds = array<i64: 1, 8>}, {pipeline_mode = #tpu.pipeline_mode<synchronous>, transform_indices = @transform_14, window_bounds = array<i64: 32, 8>}, {pipeline_mode = #tpu.pipeline_mode<synchronous>, transform_indices = @transform_15, window_bounds = array<i64: 16, 8>}, {pipeline_mode = #tpu.pipeline_mode<synchronous>, transform_indices = @transform_16, window_bounds = array<i64: 1, 8>}, {pipeline_mode = #tpu.pipeline_mode<synchronous>, transform_indices = @transform_17, window_bounds = array<i64: 8, 32>}, {pipeline_mode = #tpu.pipeline_mode<synchronous>, transform_indices = @transform_18, window_bounds = array<i64: 16, 32>}, {pipeline_mode = #tpu.pipeline_mode<synchronous>, transform_indices = @transform_19, window_bounds = array<i64: 1, 32>}, {pipeline_mode = #tpu.pipeline_mode<synchronous>, transform_indices = @transform_20, window_bounds = array<i64: 32, 32>}, {pipeline_mode = #tpu.pipeline_mode<synchronous>, transform_indices = @transform_21, window_bounds = array<i64: 16, 32>}, {pipeline_mode = #tpu.pipeline_mode<synchronous>, transform_indices = @transform_22, window_bounds = array<i64: 1, 32>}, {pipeline_mode = #tpu.pipeline_mode<synchronous>, transform_indices = @transform_23, window_bounds = array<i64: 32, 8>}, {pipeline_mode = #tpu.pipeline_mode<synchronous>, transform_indices = @transform_24, window_bounds = array<i64: 16, 8>}, {pipeline_mode = #tpu.pipeline_mode<synchronous>, transform_indices = @transform_25, window_bounds = array<i64: 1, 8>}, {pipeline_mode = #tpu.pipeline_mode<synchronous>, transform_indices = @transform_26, window_bounds = array<i64: 32, 8>}, {pipeline_mode = #tpu.pipeline_mode<synchronous>, transform_indices = @transform_27, window_bounds = array<i64: 16, 8>}, {pipeline_mode = #tpu.pipeline_mode<synchronous>, transform_indices = @transform_28, window_bounds = array<i64: 1, 8>}, {pipeline_mode = #tpu.pipeline_mode<synchronous>, transform_indices = @transform_29, window_bounds = array<i64: 32, 8>}, {pipeline_mode = #tpu.pipeline_mode<synchronous>, transform_indices = @transform_30, window_bounds = array<i64: 16, 8>}, {pipeline_mode = #tpu.pipeline_mode<synchronous>, transform_indices = @transform_31, window_bounds = array<i64: 1, 8>}, {pipeline_mode = #tpu.pipeline_mode<synchronous>, transform_indices = @transform_32, window_bounds = array<i64: 8, 8>}, {pipeline_mode = #tpu.pipeline_mode<synchronous>, transform_indices = @transform_33, window_bounds = array<i64: 16, 8>}, {pipeline_mode = #tpu.pipeline_mode<synchronous>, transform_indices = @transform_34, window_bounds = array<i64: 1, 8>}, {pipeline_mode = #tpu.pipeline_mode<synchronous>, transform_indices = @transform_35, window_bounds = array<i64: 8, 32>}, {pipeline_mode = #tpu.pipeline_mode<synchronous>, transform_indices = @transform_36, window_bounds = array<i64: 16, 32>}, {pipeline_mode = #tpu.pipeline_mode<synchronous>, transform_indices = @transform_37, window_bounds = array<i64: 1, 32>}, {pipeline_mode = #tpu.pipeline_mode<synchronous>, transform_indices = @transform_38, window_bounds = array<i64: 32, 32>}, {pipeline_mode = #tpu.pipeline_mode<synchronous>, transform_indices = @transform_39, window_bounds = array<i64: 16, 32>}, {pipeline_mode = #tpu.pipeline_mode<synchronous>, transform_indices = @transform_40, window_bounds = array<i64: 1, 32>}, {pipeline_mode = #tpu.pipeline_mode<synchronous>, transform_indices = @transform_41, window_bounds = array<i64: 32, 8>}, {pipeline_mode = #tpu.pipeline_mode<synchronous>, transform_indices = @transform_42, window_bounds = array<i64: 16, 8>}, {pipeline_mode = #tpu.pipeline_mode<synchronous>, transform_indices = @transform_43, window_bounds = array<i64: 1, 8>}, {transform_indices = @transform_44, window_bounds = array<i64: 8, 8>}, {transform_indices = @transform_45, window_bounds = array<i64: 8, 8>}]} {
    %c0 = arith.constant 0 : index
    %c0_0 = arith.constant 0 : index
    %0 = vector.load %arg1[%c0, %c0_0] : memref<8x8xf32, #tpu.memory_space<vmem>>, vector<8x8xf32>
    %c0_1 = arith.constant 0 : index
    %c0_2 = arith.constant 0 : index
    %1 = vector.load %arg2[%c0_1, %c0_2] : memref<8x32xf32, #tpu.memory_space<vmem>>, vector<8x32xf32>
    %c0_3 = arith.constant 0 : index
    %c0_4 = arith.constant 0 : index
    %2 = vector.load %arg3[%c0_3, %c0_4] : memref<8x16xf32, #tpu.memory_space<vmem>>, vector<8x16xf32>
    %c0_5 = arith.constant 0 : index
    %c0_6 = arith.constant 0 : index
    %3 = vector.load %arg5[%c0_5, %c0_6] : memref<8x32xf32, #tpu.memory_space<vmem>>, vector<8x32xf32>
    %cst = arith.constant dense<0.000000e+00> : vector<8x32xf32>
    %4 = tpu.matmul %0, %3, %cst {dimension_numbers = #tpu.dot_dimension_numbers<[1], [0], [0], [1], [0, 0, 1, 1], [], []>} : vector<8x8xf32>, vector<8x32xf32>, vector<8x32xf32> -> vector<8x32xf32>
    %c0_7 = arith.constant 0 : index
    %c0_8 = arith.constant 0 : index
    %5 = vector.load %arg6[%c0_7, %c0_8] : memref<32x32xf32, #tpu.memory_space<vmem>>, vector<32x32xf32>
    %cst_9 = arith.constant dense<0.000000e+00> : vector<8x32xf32>
    %6 = tpu.matmul %1, %5, %cst_9 {dimension_numbers = #tpu.dot_dimension_numbers<[1], [0], [0], [1], [0, 0, 1, 1], [], []>} : vector<8x32xf32>, vector<32x32xf32>, vector<8x32xf32> -> vector<8x32xf32>
    %7 = arith.addf %4, %6 : vector<8x32xf32>
    %c0_10 = arith.constant 0 : index
    %c0_11 = arith.constant 0 : index
    %8 = vector.load %arg7[%c0_10, %c0_11] : memref<16x32xf32, #tpu.memory_space<vmem>>, vector<16x32xf32>
    %cst_12 = arith.constant dense<0.000000e+00> : vector<8x32xf32>
    %9 = tpu.matmul %2, %8, %cst_12 {dimension_numbers = #tpu.dot_dimension_numbers<[1], [0], [0], [1], [0, 0, 1, 1], [], []>} : vector<8x16xf32>, vector<16x32xf32>, vector<8x32xf32> -> vector<8x32xf32>
    %10 = arith.addf %7, %9 : vector<8x32xf32>
    %c0_13 = arith.constant 0 : index
    %c0_14 = arith.constant 0 : index
    %11 = vector.load %arg8[%c0_13, %c0_14] : memref<1x32xf32, #tpu.memory_space<vmem>>, vector<1x32xf32>
    %12 = vector.broadcast %11 : vector<1x32xf32> to vector<8x32xf32>
    %13 = arith.addf %10, %12 : vector<8x32xf32>
    %14 = arith.negf %13 : vector<8x32xf32>
    %15 = math.exp %14 : vector<8x32xf32>
    %cst_15 = arith.constant 1.000000e+00 : f32
    %16 = vector.broadcast %cst_15 : f32 to vector<8x32xf32>
    %17 = arith.addf %16, %15 : vector<8x32xf32>
    %18 = arith.divf %16, %17 : vector<8x32xf32>
    %19 = arith.mulf %13, %18 : vector<8x32xf32>
    %c0_16 = arith.constant 0 : index
    %c0_17 = arith.constant 0 : index
    %20 = vector.load %arg9[%c0_16, %c0_17] : memref<32x32xf32, #tpu.memory_space<vmem>>, vector<32x32xf32>
    %cst_18 = arith.constant dense<0.000000e+00> : vector<8x32xf32>
    %21 = tpu.matmul %19, %20, %cst_18 {dimension_numbers = #tpu.dot_dimension_numbers<[1], [0], [0], [1], [0, 0, 1, 1], [], []>} : vector<8x32xf32>, vector<32x32xf32>, vector<8x32xf32> -> vector<8x32xf32>
    %c0_19 = arith.constant 0 : index
    %c0_20 = arith.constant 0 : index
    %22 = vector.load %arg10[%c0_19, %c0_20] : memref<16x32xf32, #tpu.memory_space<vmem>>, vector<16x32xf32>
    %cst_21 = arith.constant dense<0.000000e+00> : vector<8x32xf32>
    %23 = tpu.matmul %2, %22, %cst_21 {dimension_numbers = #tpu.dot_dimension_numbers<[1], [0], [0], [1], [0, 0, 1, 1], [], []>} : vector<8x16xf32>, vector<16x32xf32>, vector<8x32xf32> -> vector<8x32xf32>
    %24 = arith.addf %21, %23 : vector<8x32xf32>
    %c0_22 = arith.constant 0 : index
    %c0_23 = arith.constant 0 : index
    %25 = vector.load %arg11[%c0_22, %c0_23] : memref<1x32xf32, #tpu.memory_space<vmem>>, vector<1x32xf32>
    %26 = vector.broadcast %25 : vector<1x32xf32> to vector<8x32xf32>
    %27 = arith.addf %24, %26 : vector<8x32xf32>
    %28 = arith.negf %27 : vector<8x32xf32>
    %29 = math.exp %28 : vector<8x32xf32>
    %cst_24 = arith.constant 1.000000e+00 : f32
    %30 = vector.broadcast %cst_24 : f32 to vector<8x32xf32>
    %31 = arith.addf %30, %29 : vector<8x32xf32>
    %32 = arith.divf %30, %31 : vector<8x32xf32>
    %33 = arith.mulf %27, %32 : vector<8x32xf32>
    %c0_25 = arith.constant 0 : index
    %c0_26 = arith.constant 0 : index
    %34 = vector.load %arg12[%c0_25, %c0_26] : memref<32x8xf32, #tpu.memory_space<vmem>>, vector<32x8xf32>
    %cst_27 = arith.constant dense<0.000000e+00> : vector<8x8xf32>
    %35 = tpu.matmul %33, %34, %cst_27 {dimension_numbers = #tpu.dot_dimension_numbers<[1], [0], [0], [1], [0, 0, 1, 1], [], []>} : vector<8x32xf32>, vector<32x8xf32>, vector<8x8xf32> -> vector<8x8xf32>
    %c0_28 = arith.constant 0 : index
    %c0_29 = arith.constant 0 : index
    %36 = vector.load %arg13[%c0_28, %c0_29] : memref<16x8xf32, #tpu.memory_space<vmem>>, vector<16x8xf32>
    %cst_30 = arith.constant dense<0.000000e+00> : vector<8x8xf32>
    %37 = tpu.matmul %2, %36, %cst_30 {dimension_numbers = #tpu.dot_dimension_numbers<[1], [0], [0], [1], [0, 0, 1, 1], [], []>} : vector<8x16xf32>, vector<16x8xf32>, vector<8x8xf32> -> vector<8x8xf32>
    %38 = arith.addf %35, %37 : vector<8x8xf32>
    %c0_31 = arith.constant 0 : index
    %c0_32 = arith.constant 0 : index
    %39 = vector.load %arg14[%c0_31, %c0_32] : memref<1x8xf32, #tpu.memory_space<vmem>>, vector<1x8xf32>
    %40 = vector.broadcast %39 : vector<1x8xf32> to vector<8x8xf32>
    %41 = arith.addf %38, %40 : vector<8x8xf32>
    %42 = arith.negf %41 : vector<8x8xf32>
    %43 = math.exp %42 : vector<8x8xf32>
    %cst_33 = arith.constant 1.000000e+00 : f32
    %44 = vector.broadcast %cst_33 : f32 to vector<8x8xf32>
    %45 = arith.addf %44, %43 : vector<8x8xf32>
    %46 = arith.divf %44, %45 : vector<8x8xf32>
    %47 = arith.mulf %41, %46 : vector<8x8xf32>
    %c0_34 = arith.constant 0 : index
    %c0_35 = arith.constant 0 : index
    %48 = vector.load %arg15[%c0_34, %c0_35] : memref<32x8xf32, #tpu.memory_space<vmem>>, vector<32x8xf32>
    %cst_36 = arith.constant dense<0.000000e+00> : vector<8x8xf32>
    %49 = tpu.matmul %33, %48, %cst_36 {dimension_numbers = #tpu.dot_dimension_numbers<[1], [0], [0], [1], [0, 0, 1, 1], [], []>} : vector<8x32xf32>, vector<32x8xf32>, vector<8x8xf32> -> vector<8x8xf32>
    %c0_37 = arith.constant 0 : index
    %c0_38 = arith.constant 0 : index
    %50 = vector.load %arg16[%c0_37, %c0_38] : memref<16x8xf32, #tpu.memory_space<vmem>>, vector<16x8xf32>
    %cst_39 = arith.constant dense<0.000000e+00> : vector<8x8xf32>
    %51 = tpu.matmul %2, %50, %cst_39 {dimension_numbers = #tpu.dot_dimension_numbers<[1], [0], [0], [1], [0, 0, 1, 1], [], []>} : vector<8x16xf32>, vector<16x8xf32>, vector<8x8xf32> -> vector<8x8xf32>
    %52 = arith.addf %49, %51 : vector<8x8xf32>
    %c0_40 = arith.constant 0 : index
    %c0_41 = arith.constant 0 : index
    %53 = vector.load %arg17[%c0_40, %c0_41] : memref<1x8xf32, #tpu.memory_space<vmem>>, vector<1x8xf32>
    %54 = vector.broadcast %53 : vector<1x8xf32> to vector<8x8xf32>
    %55 = arith.addf %52, %54 : vector<8x8xf32>
    %56 = arith.negf %55 : vector<8x8xf32>
    %57 = math.exp %56 : vector<8x8xf32>
    %cst_42 = arith.constant 1.000000e+00 : f32
    %58 = vector.broadcast %cst_42 : f32 to vector<8x8xf32>
    %59 = arith.addf %58, %57 : vector<8x8xf32>
    %60 = arith.divf %58, %59 : vector<8x8xf32>
    %61 = arith.mulf %55, %60 : vector<8x8xf32>
    %c0_43 = arith.constant 0 : index
    %c0_44 = arith.constant 0 : index
    %62 = vector.load %arg18[%c0_43, %c0_44] : memref<8x32xf32, #tpu.memory_space<vmem>>, vector<8x32xf32>
    %cst_45 = arith.constant dense<0.000000e+00> : vector<8x32xf32>
    %63 = tpu.matmul %0, %62, %cst_45 {dimension_numbers = #tpu.dot_dimension_numbers<[1], [0], [0], [1], [0, 0, 1, 1], [], []>} : vector<8x8xf32>, vector<8x32xf32>, vector<8x32xf32> -> vector<8x32xf32>
    %c0_46 = arith.constant 0 : index
    %c0_47 = arith.constant 0 : index
    %64 = vector.load %arg19[%c0_46, %c0_47] : memref<16x32xf32, #tpu.memory_space<vmem>>, vector<16x32xf32>
    %cst_48 = arith.constant dense<0.000000e+00> : vector<8x32xf32>
    %65 = tpu.matmul %2, %64, %cst_48 {dimension_numbers = #tpu.dot_dimension_numbers<[1], [0], [0], [1], [0, 0, 1, 1], [], []>} : vector<8x16xf32>, vector<16x32xf32>, vector<8x32xf32> -> vector<8x32xf32>
    %66 = arith.addf %63, %65 : vector<8x32xf32>
    %c0_49 = arith.constant 0 : index
    %c0_50 = arith.constant 0 : index
    %67 = vector.load %arg20[%c0_49, %c0_50] : memref<1x32xf32, #tpu.memory_space<vmem>>, vector<1x32xf32>
    %68 = vector.broadcast %67 : vector<1x32xf32> to vector<8x32xf32>
    %69 = arith.addf %66, %68 : vector<8x32xf32>
    %70 = arith.negf %69 : vector<8x32xf32>
    %71 = math.exp %70 : vector<8x32xf32>
    %cst_51 = arith.constant 1.000000e+00 : f32
    %72 = vector.broadcast %cst_51 : f32 to vector<8x32xf32>
    %73 = arith.addf %72, %71 : vector<8x32xf32>
    %74 = arith.divf %72, %73 : vector<8x32xf32>
    %75 = arith.mulf %69, %74 : vector<8x32xf32>
    %c0_52 = arith.constant 0 : index
    %c0_53 = arith.constant 0 : index
    %76 = vector.load %arg21[%c0_52, %c0_53] : memref<32x32xf32, #tpu.memory_space<vmem>>, vector<32x32xf32>
    %cst_54 = arith.constant dense<0.000000e+00> : vector<8x32xf32>
    %77 = tpu.matmul %75, %76, %cst_54 {dimension_numbers = #tpu.dot_dimension_numbers<[1], [0], [0], [1], [0, 0, 1, 1], [], []>} : vector<8x32xf32>, vector<32x32xf32>, vector<8x32xf32> -> vector<8x32xf32>
    %c0_55 = arith.constant 0 : index
    %c0_56 = arith.constant 0 : index
    %78 = vector.load %arg22[%c0_55, %c0_56] : memref<16x32xf32, #tpu.memory_space<vmem>>, vector<16x32xf32>
    %cst_57 = arith.constant dense<0.000000e+00> : vector<8x32xf32>
    %79 = tpu.matmul %2, %78, %cst_57 {dimension_numbers = #tpu.dot_dimension_numbers<[1], [0], [0], [1], [0, 0, 1, 1], [], []>} : vector<8x16xf32>, vector<16x32xf32>, vector<8x32xf32> -> vector<8x32xf32>
    %80 = arith.addf %77, %79 : vector<8x32xf32>
    %c0_58 = arith.constant 0 : index
    %c0_59 = arith.constant 0 : index
    %81 = vector.load %arg23[%c0_58, %c0_59] : memref<1x32xf32, #tpu.memory_space<vmem>>, vector<1x32xf32>
    %82 = vector.broadcast %81 : vector<1x32xf32> to vector<8x32xf32>
    %83 = arith.addf %80, %82 : vector<8x32xf32>
    %84 = arith.negf %83 : vector<8x32xf32>
    %85 = math.exp %84 : vector<8x32xf32>
    %cst_60 = arith.constant 1.000000e+00 : f32
    %86 = vector.broadcast %cst_60 : f32 to vector<8x32xf32>
    %87 = arith.addf %86, %85 : vector<8x32xf32>
    %88 = arith.divf %86, %87 : vector<8x32xf32>
    %89 = arith.mulf %83, %88 : vector<8x32xf32>
    %c0_61 = arith.constant 0 : index
    %c0_62 = arith.constant 0 : index
    %90 = vector.load %arg24[%c0_61, %c0_62] : memref<32x8xf32, #tpu.memory_space<vmem>>, vector<32x8xf32>
    %cst_63 = arith.constant dense<0.000000e+00> : vector<8x8xf32>
    %91 = tpu.matmul %89, %90, %cst_63 {dimension_numbers = #tpu.dot_dimension_numbers<[1], [0], [0], [1], [0, 0, 1, 1], [], []>} : vector<8x32xf32>, vector<32x8xf32>, vector<8x8xf32> -> vector<8x8xf32>
    %c0_64 = arith.constant 0 : index
    %c0_65 = arith.constant 0 : index
    %92 = vector.load %arg25[%c0_64, %c0_65] : memref<16x8xf32, #tpu.memory_space<vmem>>, vector<16x8xf32>
    %cst_66 = arith.constant dense<0.000000e+00> : vector<8x8xf32>
    %93 = tpu.matmul %2, %92, %cst_66 {dimension_numbers = #tpu.dot_dimension_numbers<[1], [0], [0], [1], [0, 0, 1, 1], [], []>} : vector<8x16xf32>, vector<16x8xf32>, vector<8x8xf32> -> vector<8x8xf32>
    %94 = arith.addf %91, %93 : vector<8x8xf32>
    %c0_67 = arith.constant 0 : index
    %c0_68 = arith.constant 0 : index
    %95 = vector.load %arg26[%c0_67, %c0_68] : memref<1x8xf32, #tpu.memory_space<vmem>>, vector<1x8xf32>
    %96 = vector.broadcast %95 : vector<1x8xf32> to vector<8x8xf32>
    %97 = arith.addf %94, %96 : vector<8x8xf32>
    %98 = arith.negf %97 : vector<8x8xf32>
    %99 = math.exp %98 : vector<8x8xf32>
    %cst_69 = arith.constant 1.000000e+00 : f32
    %100 = vector.broadcast %cst_69 : f32 to vector<8x8xf32>
    %101 = arith.addf %100, %99 : vector<8x8xf32>
    %102 = arith.divf %100, %101 : vector<8x8xf32>
    %103 = arith.mulf %97, %102 : vector<8x8xf32>
    %c0_70 = arith.constant 0 : index
    %c0_71 = arith.constant 0 : index
    %104 = vector.load %arg27[%c0_70, %c0_71] : memref<32x8xf32, #tpu.memory_space<vmem>>, vector<32x8xf32>
    %cst_72 = arith.constant dense<0.000000e+00> : vector<8x8xf32>
    %105 = tpu.matmul %89, %104, %cst_72 {dimension_numbers = #tpu.dot_dimension_numbers<[1], [0], [0], [1], [0, 0, 1, 1], [], []>} : vector<8x32xf32>, vector<32x8xf32>, vector<8x8xf32> -> vector<8x8xf32>
    %c0_73 = arith.constant 0 : index
    %c0_74 = arith.constant 0 : index
    %106 = vector.load %arg28[%c0_73, %c0_74] : memref<16x8xf32, #tpu.memory_space<vmem>>, vector<16x8xf32>
    %cst_75 = arith.constant dense<0.000000e+00> : vector<8x8xf32>
    %107 = tpu.matmul %2, %106, %cst_75 {dimension_numbers = #tpu.dot_dimension_numbers<[1], [0], [0], [1], [0, 0, 1, 1], [], []>} : vector<8x16xf32>, vector<16x8xf32>, vector<8x8xf32> -> vector<8x8xf32>
    %108 = arith.addf %105, %107 : vector<8x8xf32>
    %c0_76 = arith.constant 0 : index
    %c0_77 = arith.constant 0 : index
    %109 = vector.load %arg29[%c0_76, %c0_77] : memref<1x8xf32, #tpu.memory_space<vmem>>, vector<1x8xf32>
    %110 = vector.broadcast %109 : vector<1x8xf32> to vector<8x8xf32>
    %111 = arith.addf %108, %110 : vector<8x8xf32>
    %112 = arith.negf %111 : vector<8x8xf32>
    %113 = math.exp %112 : vector<8x8xf32>
    %cst_78 = arith.constant 1.000000e+00 : f32
    %114 = vector.broadcast %cst_78 : f32 to vector<8x8xf32>
    %115 = arith.addf %114, %113 : vector<8x8xf32>
    %116 = arith.divf %114, %115 : vector<8x8xf32>
    %117 = arith.mulf %111, %116 : vector<8x8xf32>
    %c0_79 = arith.constant 0 : index
    %c0_80 = arith.constant 0 : index
    %118 = vector.load %arg30[%c0_79, %c0_80] : memref<32x8xf32, #tpu.memory_space<vmem>>, vector<32x8xf32>
    %cst_81 = arith.constant dense<0.000000e+00> : vector<8x8xf32>
    %119 = tpu.matmul %89, %118, %cst_81 {dimension_numbers = #tpu.dot_dimension_numbers<[1], [0], [0], [1], [0, 0, 1, 1], [], []>} : vector<8x32xf32>, vector<32x8xf32>, vector<8x8xf32> -> vector<8x8xf32>
    %c0_82 = arith.constant 0 : index
    %c0_83 = arith.constant 0 : index
    %120 = vector.load %arg31[%c0_82, %c0_83] : memref<16x8xf32, #tpu.memory_space<vmem>>, vector<16x8xf32>
    %cst_84 = arith.constant dense<0.000000e+00> : vector<8x8xf32>
    %121 = tpu.matmul %2, %120, %cst_84 {dimension_numbers = #tpu.dot_dimension_numbers<[1], [0], [0], [1], [0, 0, 1, 1], [], []>} : vector<8x16xf32>, vector<16x8xf32>, vector<8x8xf32> -> vector<8x8xf32>
    %122 = arith.addf %119, %121 : vector<8x8xf32>
    %c0_85 = arith.constant 0 : index
    %c0_86 = arith.constant 0 : index
    %123 = vector.load %arg32[%c0_85, %c0_86] : memref<1x8xf32, #tpu.memory_space<vmem>>, vector<1x8xf32>
    %124 = vector.broadcast %123 : vector<1x8xf32> to vector<8x8xf32>
    %125 = arith.addf %122, %124 : vector<8x8xf32>
    %126 = arith.negf %125 : vector<8x8xf32>
    %127 = math.exp %126 : vector<8x8xf32>
    %cst_87 = arith.constant 1.000000e+00 : f32
    %128 = vector.broadcast %cst_87 : f32 to vector<8x8xf32>
    %129 = arith.addf %128, %127 : vector<8x8xf32>
    %130 = arith.divf %128, %129 : vector<8x8xf32>
    %131 = arith.mulf %125, %130 : vector<8x8xf32>
    %cst_88 = arith.constant 5.000000e-01 : f32
    %132 = vector.broadcast %cst_88 : f32 to vector<8x8xf32>
    %133 = arith.mulf %132, %61 : vector<8x8xf32>
    %134 = math.exp %133 : vector<8x8xf32>
    %c0_89 = arith.constant 0 : index
    %c0_90 = arith.constant 0 : index
    %135 = vector.load %arg4[%c0_89, %c0_90] : memref<8x8xf32, #tpu.memory_space<vmem>>, vector<8x8xf32>
    %136 = arith.mulf %134, %135 : vector<8x8xf32>
    %137 = arith.addf %47, %136 : vector<8x8xf32>
    %c0_91 = arith.constant 0 : index
    %c0_92 = arith.constant 0 : index
    %138 = vector.load %arg33[%c0_91, %c0_92] : memref<8x8xf32, #tpu.memory_space<vmem>>, vector<8x8xf32>
    %cst_93 = arith.constant dense<0.000000e+00> : vector<8x8xf32>
    %139 = tpu.matmul %137, %138, %cst_93 {dimension_numbers = #tpu.dot_dimension_numbers<[1], [0], [0], [1], [0, 0, 1, 1], [], []>} : vector<8x8xf32>, vector<8x8xf32>, vector<8x8xf32> -> vector<8x8xf32>
    %c0_94 = arith.constant 0 : index
    %c0_95 = arith.constant 0 : index
    %140 = vector.load %arg34[%c0_94, %c0_95] : memref<16x8xf32, #tpu.memory_space<vmem>>, vector<16x8xf32>
    %cst_96 = arith.constant dense<0.000000e+00> : vector<8x8xf32>
    %141 = tpu.matmul %2, %140, %cst_96 {dimension_numbers = #tpu.dot_dimension_numbers<[1], [0], [0], [1], [0, 0, 1, 1], [], []>} : vector<8x16xf32>, vector<16x8xf32>, vector<8x8xf32> -> vector<8x8xf32>
    %142 = arith.addf %139, %141 : vector<8x8xf32>
    %c0_97 = arith.constant 0 : index
    %c0_98 = arith.constant 0 : index
    %143 = vector.load %arg35[%c0_97, %c0_98] : memref<1x8xf32, #tpu.memory_space<vmem>>, vector<1x8xf32>
    %144 = vector.broadcast %143 : vector<1x8xf32> to vector<8x8xf32>
    %145 = arith.addf %142, %144 : vector<8x8xf32>
    %146 = arith.addf %0, %103 : vector<8x8xf32>
    %147 = arith.addf %146, %145 : vector<8x8xf32>
    %c0_99 = arith.constant 0 : index
    %c0_100 = arith.constant 0 : index
    %148 = vector.load %arg36[%c0_99, %c0_100] : memref<8x32xf32, #tpu.memory_space<vmem>>, vector<8x32xf32>
    %cst_101 = arith.constant dense<0.000000e+00> : vector<8x32xf32>
    %149 = tpu.matmul %147, %148, %cst_101 {dimension_numbers = #tpu.dot_dimension_numbers<[1], [0], [0], [1], [0, 0, 1, 1], [], []>} : vector<8x8xf32>, vector<8x32xf32>, vector<8x32xf32> -> vector<8x32xf32>
    %c0_102 = arith.constant 0 : index
    %c0_103 = arith.constant 0 : index
    %150 = vector.load %arg37[%c0_102, %c0_103] : memref<16x32xf32, #tpu.memory_space<vmem>>, vector<16x32xf32>
    %cst_104 = arith.constant dense<0.000000e+00> : vector<8x32xf32>
    %151 = tpu.matmul %2, %150, %cst_104 {dimension_numbers = #tpu.dot_dimension_numbers<[1], [0], [0], [1], [0, 0, 1, 1], [], []>} : vector<8x16xf32>, vector<16x32xf32>, vector<8x32xf32> -> vector<8x32xf32>
    %152 = arith.addf %149, %151 : vector<8x32xf32>
    %c0_105 = arith.constant 0 : index
    %c0_106 = arith.constant 0 : index
    %153 = vector.load %arg38[%c0_105, %c0_106] : memref<1x32xf32, #tpu.memory_space<vmem>>, vector<1x32xf32>
    %154 = vector.broadcast %153 : vector<1x32xf32> to vector<8x32xf32>
    %155 = arith.addf %152, %154 : vector<8x32xf32>
    %156 = arith.negf %155 : vector<8x32xf32>
    %157 = math.exp %156 : vector<8x32xf32>
    %cst_107 = arith.constant 1.000000e+00 : f32
    %158 = vector.broadcast %cst_107 : f32 to vector<8x32xf32>
    %159 = arith.addf %158, %157 : vector<8x32xf32>
    %160 = arith.divf %158, %159 : vector<8x32xf32>
    %161 = arith.mulf %155, %160 : vector<8x32xf32>
    %c0_108 = arith.constant 0 : index
    %c0_109 = arith.constant 0 : index
    %162 = vector.load %arg39[%c0_108, %c0_109] : memref<32x32xf32, #tpu.memory_space<vmem>>, vector<32x32xf32>
    %cst_110 = arith.constant dense<0.000000e+00> : vector<8x32xf32>
    %163 = tpu.matmul %161, %162, %cst_110 {dimension_numbers = #tpu.dot_dimension_numbers<[1], [0], [0], [1], [0, 0, 1, 1], [], []>} : vector<8x32xf32>, vector<32x32xf32>, vector<8x32xf32> -> vector<8x32xf32>
    %c0_111 = arith.constant 0 : index
    %c0_112 = arith.constant 0 : index
    %164 = vector.load %arg40[%c0_111, %c0_112] : memref<16x32xf32, #tpu.memory_space<vmem>>, vector<16x32xf32>
    %cst_113 = arith.constant dense<0.000000e+00> : vector<8x32xf32>
    %165 = tpu.matmul %2, %164, %cst_113 {dimension_numbers = #tpu.dot_dimension_numbers<[1], [0], [0], [1], [0, 0, 1, 1], [], []>} : vector<8x16xf32>, vector<16x32xf32>, vector<8x32xf32> -> vector<8x32xf32>
    %166 = arith.addf %163, %165 : vector<8x32xf32>
    %c0_114 = arith.constant 0 : index
    %c0_115 = arith.constant 0 : index
    %167 = vector.load %arg41[%c0_114, %c0_115] : memref<1x32xf32, #tpu.memory_space<vmem>>, vector<1x32xf32>
    %168 = vector.broadcast %167 : vector<1x32xf32> to vector<8x32xf32>
    %169 = arith.addf %166, %168 : vector<8x32xf32>
    %170 = arith.negf %169 : vector<8x32xf32>
    %171 = math.exp %170 : vector<8x32xf32>
    %cst_116 = arith.constant 1.000000e+00 : f32
    %172 = vector.broadcast %cst_116 : f32 to vector<8x32xf32>
    %173 = arith.addf %172, %171 : vector<8x32xf32>
    %174 = arith.divf %172, %173 : vector<8x32xf32>
    %175 = arith.mulf %169, %174 : vector<8x32xf32>
    %c0_117 = arith.constant 0 : index
    %c0_118 = arith.constant 0 : index
    %176 = vector.load %arg42[%c0_117, %c0_118] : memref<32x8xf32, #tpu.memory_space<vmem>>, vector<32x8xf32>
    %cst_119 = arith.constant dense<0.000000e+00> : vector<8x8xf32>
    %177 = tpu.matmul %175, %176, %cst_119 {dimension_numbers = #tpu.dot_dimension_numbers<[1], [0], [0], [1], [0, 0, 1, 1], [], []>} : vector<8x32xf32>, vector<32x8xf32>, vector<8x8xf32> -> vector<8x8xf32>
    %c0_120 = arith.constant 0 : index
    %c0_121 = arith.constant 0 : index
    %178 = vector.load %arg43[%c0_120, %c0_121] : memref<16x8xf32, #tpu.memory_space<vmem>>, vector<16x8xf32>
    %cst_122 = arith.constant dense<0.000000e+00> : vector<8x8xf32>
    %179 = tpu.matmul %2, %178, %cst_122 {dimension_numbers = #tpu.dot_dimension_numbers<[1], [0], [0], [1], [0, 0, 1, 1], [], []>} : vector<8x16xf32>, vector<16x8xf32>, vector<8x8xf32> -> vector<8x8xf32>
    %180 = arith.addf %177, %179 : vector<8x8xf32>
    %c0_123 = arith.constant 0 : index
    %c0_124 = arith.constant 0 : index
    %181 = vector.load %arg44[%c0_123, %c0_124] : memref<1x8xf32, #tpu.memory_space<vmem>>, vector<1x8xf32>
    %182 = vector.broadcast %181 : vector<1x8xf32> to vector<8x8xf32>
    %183 = arith.addf %180, %182 : vector<8x8xf32>
    %184 = arith.negf %183 : vector<8x8xf32>
    %185 = math.exp %184 : vector<8x8xf32>
    %cst_125 = arith.constant 1.000000e+00 : f32
    %186 = vector.broadcast %cst_125 : f32 to vector<8x8xf32>
    %187 = arith.addf %186, %185 : vector<8x8xf32>
    %188 = arith.divf %186, %187 : vector<8x8xf32>
    %189 = arith.mulf %183, %188 : vector<8x8xf32>
    %190 = arith.addf %189, %147 : vector<8x8xf32>
    %c0_126 = arith.constant 0 : index
    %c0_127 = arith.constant 0 : index
    %191 = vector.load %arg45[%c0_126, %c0_127] : memref<8x8xf32, #tpu.memory_space<vmem>>, vector<8x8xf32>
    tpu.vector_store %arg45[%c0_126, %c0_127], %190 {strides = array<i32>} : memref<8x8xf32, #tpu.memory_space<vmem>>, vector<8x8xf32>,
    %192 = arith.subf %131, %61 : vector<8x8xf32>
    %193 = math.exp %61 : vector<8x8xf32>
    %194 = arith.subf %47, %117 : vector<8x8xf32>
    %195 = arith.mulf %194, %194 : vector<8x8xf32>
    %196 = arith.addf %193, %195 : vector<8x8xf32>
    %cst_128 = arith.constant 0.000000e+00 : f32
    %197 = vector.broadcast %cst_128 : f32 to vector<8x8xf32>
    %198 = arith.subf %197, %131 : vector<8x8xf32>
    %199 = math.exp %198 : vector<8x8xf32>
    %200 = arith.mulf %196, %199 : vector<8x8xf32>
    %201 = arith.addf %192, %200 : vector<8x8xf32>
    %cst_129 = arith.constant 1.000000e+00 : f32
    %202 = vector.broadcast %cst_129 : f32 to vector<8x8xf32>
    %203 = arith.subf %201, %202 : vector<8x8xf32>
    %cst_130 = arith.constant 5.000000e-01 : f32
    %204 = vector.broadcast %cst_130 : f32 to vector<8x8xf32>
    %205 = arith.mulf %204, %203 : vector<8x8xf32>
    %c0_131 = arith.constant 0 : index
    %c0_132 = arith.constant 0 : index
    %206 = vector.load %arg46[%c0_131, %c0_132] : memref<8x8xf32, #tpu.memory_space<vmem>>, vector<8x8xf32>
    tpu.vector_store %arg46[%c0_131, %c0_132], %205 {strides = array<i32>} : memref<8x8xf32, #tpu.memory_space<vmem>>, vector<8x8xf32>,
    return
  }
  func.func @transform_0(%arg0: i32) -> (i32, i32) {
    %c0_i32 = arith.constant 0 : i32
    %c0_i32_0 = arith.constant 0 : i32
    return %arg0, %c0_i32 : i32, i32
  }
  func.func @transform_1(%arg0: i32) -> (i32, i32) {
    %c0_i32 = arith.constant 0 : i32
    %c0_i32_0 = arith.constant 0 : i32
    return %arg0, %c0_i32 : i32, i32
  }
  func.func @transform_2(%arg0: i32) -> (i32, i32) {
    %c0_i32 = arith.constant 0 : i32
    %c0_i32_0 = arith.constant 0 : i32
    return %arg0, %c0_i32 : i32, i32
  }
  func.func @transform_3(%arg0: i32) -> (i32, i32) {
    %c0_i32 = arith.constant 0 : i32
    %c0_i32_0 = arith.constant 0 : i32
    return %arg0, %c0_i32 : i32, i32
  }
  func.func @transform_4(%arg0: i32) -> (i32, i32) {
    %c0_i32 = arith.constant 0 : i32
    %c0_i32_0 = arith.constant 0 : i32
    %c0_i32_1 = arith.constant 0 : i32
    return %c0_i32, %c0_i32_0 : i32, i32
  }
  func.func @transform_5(%arg0: i32) -> (i32, i32) {
    %c0_i32 = arith.constant 0 : i32
    %c0_i32_0 = arith.constant 0 : i32
    %c0_i32_1 = arith.constant 0 : i32
    return %c0_i32, %c0_i32_0 : i32, i32
  }
  func.func @transform_6(%arg0: i32) -> (i32, i32) {
    %c0_i32 = arith.constant 0 : i32
    %c0_i32_0 = arith.constant 0 : i32
    %c0_i32_1 = arith.constant 0 : i32
    return %c0_i32, %c0_i32_0 : i32, i32
  }
  func.func @transform_7(%arg0: i32) -> (i32, i32) {
    %c0_i32 = arith.constant 0 : i32
    %c0_i32_0 = arith.constant 0 : i32
    %c0_i32_1 = arith.constant 0 : i32
    return %c0_i32, %c0_i32_0 : i32, i32
  }
  func.func @transform_8(%arg0: i32) -> (i32, i32) {
    %c0_i32 = arith.constant 0 : i32
    %c0_i32_0 = arith.constant 0 : i32
    %c0_i32_1 = arith.constant 0 : i32
    return %c0_i32, %c0_i32_0 : i32, i32
  }
  func.func @transform_9(%arg0: i32) -> (i32, i32) {
    %c0_i32 = arith.constant 0 : i32
    %c0_i32_0 = arith.constant 0 : i32
    %c0_i32_1 = arith.constant 0 : i32
    return %c0_i32, %c0_i32_0 : i32, i32
  }
  func.func @transform_10(%arg0: i32) -> (i32, i32) {
    %c0_i32 = arith.constant 0 : i32
    %c0_i32_0 = arith.constant 0 : i32
    %c0_i32_1 = arith.constant 0 : i32
    return %c0_i32, %c0_i32_0 : i32, i32
  }
  func.func @transform_11(%arg0: i32) -> (i32, i32) {
    %c0_i32 = arith.constant 0 : i32
    %c0_i32_0 = arith.constant 0 : i32
    %c0_i32_1 = arith.constant 0 : i32
    return %c0_i32, %c0_i32_0 : i32, i32
  }
  func.func @transform_12(%arg0: i32) -> (i32, i32) {
    %c0_i32 = arith.constant 0 : i32
    %c0_i32_0 = arith.constant 0 : i32
    %c0_i32_1 = arith.constant 0 : i32
    return %c0_i32, %c0_i32_0 : i32, i32
  }
  func.func @transform_13(%arg0: i32) -> (i32, i32) {
    %c0_i32 = arith.constant 0 : i32
    %c0_i32_0 = arith.constant 0 : i32
    %c0_i32_1 = arith.constant 0 : i32
    return %c0_i32, %c0_i32_0 : i32, i32
  }
  func.func @transform_14(%arg0: i32) -> (i32, i32) {
    %c0_i32 = arith.constant 0 : i32
    %c0_i32_0 = arith.constant 0 : i32
    %c0_i32_1 = arith.constant 0 : i32
    return %c0_i32, %c0_i32_0 : i32, i32
  }
  func.func @transform_15(%arg0: i32) -> (i32, i32) {
    %c0_i32 = arith.constant 0 : i32
    %c0_i32_0 = arith.constant 0 : i32
    %c0_i32_1 = arith.constant 0 : i32
    return %c0_i32, %c0_i32_0 : i32, i32
  }
  func.func @transform_16(%arg0: i32) -> (i32, i32) {
    %c0_i32 = arith.constant 0 : i32
    %c0_i32_0 = arith.constant 0 : i32
    %c0_i32_1 = arith.constant 0 : i32
    return %c0_i32, %c0_i32_0 : i32, i32
  }
  func.func @transform_17(%arg0: i32) -> (i32, i32) {
    %c0_i32 = arith.constant 0 : i32
    %c0_i32_0 = arith.constant 0 : i32
    %c0_i32_1 = arith.constant 0 : i32
    return %c0_i32, %c0_i32_0 : i32, i32
  }
  func.func @transform_18(%arg0: i32) -> (i32, i32) {
    %c0_i32 = arith.constant 0 : i32
    %c0_i32_0 = arith.constant 0 : i32
    %c0_i32_1 = arith.constant 0 : i32
    return %c0_i32, %c0_i32_0 : i32, i32
  }
  func.func @transform_19(%arg0: i32) -> (i32, i32) {
    %c0_i32 = arith.constant 0 : i32
    %c0_i32_0 = arith.constant 0 : i32
    %c0_i32_1 = arith.constant 0 : i32
    return %c0_i32, %c0_i32_0 : i32, i32
  }
  func.func @transform_20(%arg0: i32) -> (i32, i32) {
    %c0_i32 = arith.constant 0 : i32
    %c0_i32_0 = arith.constant 0 : i32
    %c0_i32_1 = arith.constant 0 : i32
    return %c0_i32, %c0_i32_0 : i32, i32
  }
  func.func @transform_21(%arg0: i32) -> (i32, i32) {
    %c0_i32 = arith.constant 0 : i32
    %c0_i32_0 = arith.constant 0 : i32
    %c0_i32_1 = arith.constant 0 : i32
    return %c0_i32, %c0_i32_0 : i32, i32
  }
  func.func @transform_22(%arg0: i32) -> (i32, i32) {
    %c0_i32 = arith.constant 0 : i32
    %c0_i32_0 = arith.constant 0 : i32
    %c0_i32_1 = arith.constant 0 : i32
    return %c0_i32, %c0_i32_0 : i32, i32
  }
  func.func @transform_23(%arg0: i32) -> (i32, i32) {
    %c0_i32 = arith.constant 0 : i32
    %c0_i32_0 = arith.constant 0 : i32
    %c0_i32_1 = arith.constant 0 : i32
    return %c0_i32, %c0_i32_0 : i32, i32
  }
  func.func @transform_24(%arg0: i32) -> (i32, i32) {
    %c0_i32 = arith.constant 0 : i32
    %c0_i32_0 = arith.constant 0 : i32
    %c0_i32_1 = arith.constant 0 : i32
    return %c0_i32, %c0_i32_0 : i32, i32
  }
  func.func @transform_25(%arg0: i32) -> (i32, i32) {
    %c0_i32 = arith.constant 0 : i32
    %c0_i32_0 = arith.constant 0 : i32
    %c0_i32_1 = arith.constant 0 : i32
    return %c0_i32, %c0_i32_0 : i32, i32
  }
  func.func @transform_26(%arg0: i32) -> (i32, i32) {
    %c0_i32 = arith.constant 0 : i32
    %c0_i32_0 = arith.constant 0 : i32
    %c0_i32_1 = arith.constant 0 : i32
    return %c0_i32, %c0_i32_0 : i32, i32
  }
  func.func @transform_27(%arg0: i32) -> (i32, i32) {
    %c0_i32 = arith.constant 0 : i32
    %c0_i32_0 = arith.constant 0 : i32
    %c0_i32_1 = arith.constant 0 : i32
    return %c0_i32, %c0_i32_0 : i32, i32
  }
  func.func @transform_28(%arg0: i32) -> (i32, i32) {
    %c0_i32 = arith.constant 0 : i32
    %c0_i32_0 = arith.constant 0 : i32
    %c0_i32_1 = arith.constant 0 : i32
    return %c0_i32, %c0_i32_0 : i32, i32
  }
  func.func @transform_29(%arg0: i32) -> (i32, i32) {
    %c0_i32 = arith.constant 0 : i32
    %c0_i32_0 = arith.constant 0 : i32
    %c0_i32_1 = arith.constant 0 : i32
    return %c0_i32, %c0_i32_0 : i32, i32
  }
  func.func @transform_30(%arg0: i32) -> (i32, i32) {
    %c0_i32 = arith.constant 0 : i32
    %c0_i32_0 = arith.constant 0 : i32
    %c0_i32_1 = arith.constant 0 : i32
    return %c0_i32, %c0_i32_0 : i32, i32
  }
  func.func @transform_31(%arg0: i32) -> (i32, i32) {
    %c0_i32 = arith.constant 0 : i32
    %c0_i32_0 = arith.constant 0 : i32
    %c0_i32_1 = arith.constant 0 : i32
    return %c0_i32, %c0_i32_0 : i32, i32
  }
  func.func @transform_32(%arg0: i32) -> (i32, i32) {
    %c0_i32 = arith.constant 0 : i32
    %c0_i32_0 = arith.constant 0 : i32
    %c0_i32_1 = arith.constant 0 : i32
    return %c0_i32, %c0_i32_0 : i32, i32
  }
  func.func @transform_33(%arg0: i32) -> (i32, i32) {
    %c0_i32 = arith.constant 0 : i32
    %c0_i32_0 = arith.constant 0 : i32
    %c0_i32_1 = arith.constant 0 : i32
    return %c0_i32, %c0_i32_0 : i32, i32
  }
  func.func @transform_34(%arg0: i32) -> (i32, i32) {
    %c0_i32 = arith.constant 0 : i32
    %c0_i32_0 = arith.constant 0 : i32
    %c0_i32_1 = arith.constant 0 : i32
    return %c0_i32, %c0_i32_0 : i32, i32
  }
  func.func @transform_35(%arg0: i32) -> (i32, i32) {
    %c0_i32 = arith.constant 0 : i32
    %c0_i32_0 = arith.constant 0 : i32
    %c0_i32_1 = arith.constant 0 : i32
    return %c0_i32, %c0_i32_0 : i32, i32
  }
  func.func @transform_36(%arg0: i32) -> (i32, i32) {
    %c0_i32 = arith.constant 0 : i32
    %c0_i32_0 = arith.constant 0 : i32
    %c0_i32_1 = arith.constant 0 : i32
    return %c0_i32, %c0_i32_0 : i32, i32
  }
  func.func @transform_37(%arg0: i32) -> (i32, i32) {
    %c0_i32 = arith.constant 0 : i32
    %c0_i32_0 = arith.constant 0 : i32
    %c0_i32_1 = arith.constant 0 : i32
    return %c0_i32, %c0_i32_0 : i32, i32
  }
  func.func @transform_38(%arg0: i32) -> (i32, i32) {
    %c0_i32 = arith.constant 0 : i32
    %c0_i32_0 = arith.constant 0 : i32
    %c0_i32_1 = arith.constant 0 : i32
    return %c0_i32, %c0_i32_0 : i32, i32
  }
  func.func @transform_39(%arg0: i32) -> (i32, i32) {
    %c0_i32 = arith.constant 0 : i32
    %c0_i32_0 = arith.constant 0 : i32
    %c0_i32_1 = arith.constant 0 : i32
    return %c0_i32, %c0_i32_0 : i32, i32
  }
  func.func @transform_40(%arg0: i32) -> (i32, i32) {
    %c0_i32 = arith.constant 0 : i32
    %c0_i32_0 = arith.constant 0 : i32
    %c0_i32_1 = arith.constant 0 : i32
    return %c0_i32, %c0_i32_0 : i32, i32
  }
  func.func @transform_41(%arg0: i32) -> (i32, i32) {
    %c0_i32 = arith.constant 0 : i32
    %c0_i32_0 = arith.constant 0 : i32
    %c0_i32_1 = arith.constant 0 : i32
    return %c0_i32, %c0_i32_0 : i32, i32
  }
  func.func @transform_42(%arg0: i32) -> (i32, i32) {
    %c0_i32 = arith.constant 0 : i32
    %c0_i32_0 = arith.constant 0 : i32
    %c0_i32_1 = arith.constant 0 : i32
    return %c0_i32, %c0_i32_0 : i32, i32
  }
  func.func @transform_43(%arg0: i32) -> (i32, i32) {
    %c0_i32 = arith.constant 0 : i32
    %c0_i32_0 = arith.constant 0 : i32
    %c0_i32_1 = arith.constant 0 : i32
    return %c0_i32, %c0_i32_0 : i32, i32
  }
  func.func @transform_44(%arg0: i32) -> (i32, i32) {
    %c0_i32 = arith.constant 0 : i32
    %c0_i32_0 = arith.constant 0 : i32
    return %arg0, %c0_i32 : i32, i32
  }
  func.func @transform_45(%arg0: i32) -> (i32, i32) {
    %c0_i32 = arith.constant 0 : i32
    %c0_i32_0 = arith.constant 0 : i32
    return %arg0, %c0_i32 : i32, i32
  }
}

</mosaic_0001>

<llo_original>
// kernel: topdown_forward.1
$region0: #{topdown_forward.1}
  #allocation0 [shape = 'u32[]', space=smem, size = 0x4, offset = 0x4, fixed_abs, tag = 'smem constant byte address 0x4 - core index']
  #allocation1 [shape = 'u32[72,128]{1,0:T(1,128)}', space=vmem, size = 0x9000, scoped, tag = 'internal scratch']
  %s0 = inlined_call_operand.smem [shape: u32[46], index: -1, kind: input, shape index: {}]
  %s1 = sld [smem:[%s0]]
  %s2 = scalar_lea.smem %s0, 1
  %s3 = sld [smem:[%s2]]
  %s4 = scalar_lea.smem %s0, 2
  %s5 = sld [smem:[%s4]]
  %s6 = scalar_lea.smem %s0, 3
  %s7 = sld [smem:[%s6]]
  %s8 = scalar_lea.smem %s0, 4
  %s9 = sld [smem:[%s8]]
  %s10 = scalar_lea.smem %s0, 5
  %s11 = sld [smem:[%s10]]
  %s12 = scalar_lea.smem %s0, 6
  %s13 = sld [smem:[%s12]]
  %s14 = scalar_lea.smem %s0, 7
  %s15 = sld [smem:[%s14]]
  %s16 = scalar_lea.smem %s0, 8
  %s17 = sld [smem:[%s16]]
  %s18 = scalar_lea.smem %s0, 9
  %s19 = sld [smem:[%s18]]
  %s20 = scalar_lea.smem %s0, 10
  %s21 = sld [smem:[%s20]]
  %s22 = scalar_lea.smem %s0, 11
  %s23 = sld [smem:[%s22]]
  %s24 = scalar_lea.smem %s0, 12
  %s25 = sld [smem:[%s24]]
  %s26 = scalar_lea.smem %s0, 13
  %s27 = sld [smem:[%s26]]
  %s28 = scalar_lea.smem %s0, 14
  %s29 = sld [smem:[%s28]]
  %s30 = scalar_lea.smem %s0, 15
  %s31 = sld [smem:[%s30]]
  %s32 = scalar_lea.smem %s0, 16
  %s33 = sld [smem:[%s32]]
  %s34 = scalar_lea.smem %s0, 17
  %s35 = sld [smem:[%s34]]
  %s36 = scalar_lea.smem %s0, 18
  %s37 = sld [smem:[%s36]]
  %s38 = scalar_lea.smem %s0, 19
  %s39 = sld [smem:[%s38]]
  %s40 = scalar_lea.smem %s0, 20
  %s41 = sld [smem:[%s40]]
  %s42 = scalar_lea.smem %s0, 21
  %s43 = sld [smem:[%s42]]
  %s44 = scalar_lea.smem %s0, 22
  %s45 = sld [smem:[%s44]]
  %s46 = scalar_lea.smem %s0, 23
  %s47 = sld [smem:[%s46]]
  %s48 = scalar_lea.smem %s0, 24
  %s49 = sld [smem:[%s48]]
  %s50 = scalar_lea.smem %s0, 25
  %s51 = sld [smem:[%s50]]
  %s52 = scalar_lea.smem %s0, 26
  %s53 = sld [smem:[%s52]]
  %s54 = scalar_lea.smem %s0, 27
  %s55 = sld [smem:[%s54]]
  %s56 = scalar_lea.smem %s0, 28
  %s57 = sld [smem:[%s56]]
  %s58 = scalar_lea.smem %s0, 29
  %s59 = sld [smem:[%s58]]
  %s60 = scalar_lea.smem %s0, 30
  %s61 = sld [smem:[%s60]]
  %s62 = scalar_lea.smem %s0, 31
  %s63 = sld [smem:[%s62]]
  %s64 = scalar_lea.smem %s0, 32
  %s65 = sld [smem:[%s64]]
  %s66 = scalar_lea.smem %s0, 33
  %s67 = sld [smem:[%s66]]
  %s68 = scalar_lea.smem %s0, 34
  %s69 = sld [smem:[%s68]]
  %s70 = scalar_lea.smem %s0, 35
  %s71 = sld [smem:[%s70]]
  %s72 = scalar_lea.smem %s0, 36
  %s73 = sld [smem:[%s72]]
  %s74 = scalar_lea.smem %s0, 37
  %s75 = sld [smem:[%s74]]
  %s76 = scalar_lea.smem %s0, 38
  %s77 = sld [smem:[%s76]]
  %s78 = scalar_lea.smem %s0, 39
  %s79 = sld [smem:[%s78]]
  %s80 = scalar_lea.smem %s0, 40
  %s81 = sld [smem:[%s80]]
  %s82 = scalar_lea.smem %s0, 41
  %s83 = sld [smem:[%s82]]
  %s84 = scalar_lea.smem %s0, 42
  %s85 = sld [smem:[%s84]]
  %s86 = scalar_lea.smem %s0, 43
  %s87 = sld [smem:[%s86]]
  %s88 = scalar_lea.smem %s0, 44
  %s89 = sld [smem:[%s88]]
  %s90 = scalar_lea.smem %s0, 45
  %s91 = sld [smem:[%s90]]
  %92 = xla_tuple %s89, %s91
  %s93 = sld [smem:[#allocation0]]
  $region194: #{topdown_forward.1} parent=0
    _
  %s95 = ssub.s32 1, %s93
  %s96 = scalar_select 0, %s95, %s93
  // Predicated region
  $region2: #{topdown_forward.1} parent=0 // pred_check
    _
  $region3: #{topdown_forward.1} parent=0 // pred_check_branch
    %98 = sbr.rel (0) target = $region5
  $region4: #{topdown_forward.1} parent=0 // pred_region
    _
  $region5: #{topdown_forward.1} parent=0 // pred_fallthru
    _
  // Predicated region
  $region6: #{topdown_forward.1} parent=0 // pred_check
    _
  $region7: #{topdown_forward.1} parent=0 // pred_check_branch
    %100 = sbr.rel (0) target = $region9
  $region8: #{topdown_forward.1} parent=0 // pred_region
    _
  $region9: #{topdown_forward.1} parent=0 // pred_fallthru
    _
  // Predicated region
  $region10: #{topdown_forward.1} parent=0 // pred_check
    _
  $region11: #{topdown_forward.1} parent=0 // pred_check_branch
    %102 = sbr.rel (0) target = $region13
  $region12: #{topdown_forward.1} parent=0 // pred_region
    _
  $region13: #{topdown_forward.1} parent=0 // pred_fallthru
    _
  // Predicated region
  $region14: #{topdown_forward.1} parent=0 // pred_check
    _
  $region15: #{topdown_forward.1} parent=0 // pred_check_branch
    %104 = sbr.rel (0) target = $region17
  $region16: #{topdown_forward.1} parent=0 // pred_region
    _
  $region17: #{topdown_forward.1} parent=0 // pred_fallthru
    _
  // Predicated region
  $region18: #{topdown_forward.1} parent=0 // pred_check
    _
  $region19: #{topdown_forward.1} parent=0 // pred_check_branch
    %106 = sbr.rel (0) target = $region21
  $region20: #{topdown_forward.1} parent=0 // pred_region
    _
  $region21: #{topdown_forward.1} parent=0 // pred_fallthru
    _
  // Predicated region
  $region22: #{topdown_forward.1} parent=0 // pred_check
    _
  $region23: #{topdown_forward.1} parent=0 // pred_check_branch
    %108 = sbr.rel (0) target = $region25
  $region24: #{topdown_forward.1} parent=0 // pred_region
    _
  $region25: #{topdown_forward.1} parent=0 // pred_fallthru
    _
  // Predicated region
  $region26: #{topdown_forward.1} parent=0 // pred_check
    _
  $region27: #{topdown_forward.1} parent=0 // pred_check_branch
    %110 = sbr.rel (0) target = $region29
  $region28: #{topdown_forward.1} parent=0 // pred_region
    _
  $region29: #{topdown_forward.1} parent=0 // pred_fallthru
    _
  // Predicated region
  $region30: #{topdown_forward.1} parent=0 // pred_check
    _
  $region31: #{topdown_forward.1} parent=0 // pred_check_branch
    %112 = sbr.rel (0) target = $region33
  $region32: #{topdown_forward.1} parent=0 // pred_region
    _
  $region33: #{topdown_forward.1} parent=0 // pred_fallthru
    _
  // Predicated region
  $region34: #{topdown_forward.1} parent=0 // pred_check
    _
  $region35: #{topdown_forward.1} parent=0 // pred_check_branch
    %114 = sbr.rel (0) target = $region37
  $region36: #{topdown_forward.1} parent=0 // pred_region
    _
  $region37: #{topdown_forward.1} parent=0 // pred_fallthru
    _
  // Predicated region
  $region38: #{topdown_forward.1} parent=0 // pred_check
    _
  $region39: #{topdown_forward.1} parent=0 // pred_check_branch
    %116 = sbr.rel (0) target = $region41
  $region40: #{topdown_forward.1} parent=0 // pred_region
    _
  $region41: #{topdown_forward.1} parent=0 // pred_fallthru
    _
  // Predicated region
  $region42: #{topdown_forward.1} parent=0 // pred_check
    _
  $region43: #{topdown_forward.1} parent=0 // pred_check_branch
    %118 = sbr.rel (0) target = $region45
  $region44: #{topdown_forward.1} parent=0 // pred_region
    _
  $region45: #{topdown_forward.1} parent=0 // pred_fallthru
    _
  // Predicated region
  $region46: #{topdown_forward.1} parent=0 // pred_check
    _
  $region47: #{topdown_forward.1} parent=0 // pred_check_branch
    %120 = sbr.rel (0) target = $region49
  $region48: #{topdown_forward.1} parent=0 // pred_region
    _
  $region49: #{topdown_forward.1} parent=0 // pred_fallthru
    _
  // Predicated region
  $region50: #{topdown_forward.1} parent=0 // pred_check
    _
  $region51: #{topdown_forward.1} parent=0 // pred_check_branch
    %122 = sbr.rel (0) target = $region53
  $region52: #{topdown_forward.1} parent=0 // pred_region
    _
  $region53: #{topdown_forward.1} parent=0 // pred_fallthru
    _
  // Predicated region
  $region54: #{topdown_forward.1} parent=0 // pred_check
    _
  $region55: #{topdown_forward.1} parent=0 // pred_check_branch
    %124 = sbr.rel (0) target = $region57
  $region56: #{topdown_forward.1} parent=0 // pred_region
    _
  $region57: #{topdown_forward.1} parent=0 // pred_fallthru
    _
  // Predicated region
  $region58: #{topdown_forward.1} parent=0 // pred_check
    _
  $region59: #{topdown_forward.1} parent=0 // pred_check_branch
    %126 = sbr.rel (0) target = $region61
  $region60: #{topdown_forward.1} parent=0 // pred_region
    _
  $region61: #{topdown_forward.1} parent=0 // pred_fallthru
    _
  // Predicated region
  $region62: #{topdown_forward.1} parent=0 // pred_check
    _
  $region63: #{topdown_forward.1} parent=0 // pred_check_branch
    %128 = sbr.rel (0) target = $region65
  $region64: #{topdown_forward.1} parent=0 // pred_region
    _
  $region65: #{topdown_forward.1} parent=0 // pred_fallthru
    _
  // Predicated region
  $region66: #{topdown_forward.1} parent=0 // pred_check
    _
  $region67: #{topdown_forward.1} parent=0 // pred_check_branch
    %130 = sbr.rel (0) target = $region69
  $region68: #{topdown_forward.1} parent=0 // pred_region
    _
  $region69: #{topdown_forward.1} parent=0 // pred_fallthru
    _
  // Predicated region
  $region70: #{topdown_forward.1} parent=0 // pred_check
    _
  $region71: #{topdown_forward.1} parent=0 // pred_check_branch
    %132 = sbr.rel (0) target = $region73
  $region72: #{topdown_forward.1} parent=0 // pred_region
    _
  $region73: #{topdown_forward.1} parent=0 // pred_fallthru
    _
  // Predicated region
  $region74: #{topdown_forward.1} parent=0 // pred_check
    _
  $region75: #{topdown_forward.1} parent=0 // pred_check_branch
    %134 = sbr.rel (0) target = $region77
  $region76: #{topdown_forward.1} parent=0 // pred_region
    _
  $region77: #{topdown_forward.1} parent=0 // pred_fallthru
    _
  // Predicated region
  $region78: #{topdown_forward.1} parent=0 // pred_check
    _
  $region79: #{topdown_forward.1} parent=0 // pred_check_branch
    %136 = sbr.rel (0) target = $region81
  $region80: #{topdown_forward.1} parent=0 // pred_region
    _
  $region81: #{topdown_forward.1} parent=0 // pred_fallthru
    _
  // Predicated region
  $region82: #{topdown_forward.1} parent=0 // pred_check
    _
  $region83: #{topdown_forward.1} parent=0 // pred_check_branch
    %138 = sbr.rel (0) target = $region85
  $region84: #{topdown_forward.1} parent=0 // pred_region
    _
  $region85: #{topdown_forward.1} parent=0 // pred_fallthru
    _
  // Predicated region
  $region86: #{topdown_forward.1} parent=0 // pred_check
    _
  $region87: #{topdown_forward.1} parent=0 // pred_check_branch
    %140 = sbr.rel (0) target = $region89
  $region88: #{topdown_forward.1} parent=0 // pred_region
    _
  $region89: #{topdown_forward.1} parent=0 // pred_fallthru
    _
  // Predicated region
  $region90: #{topdown_forward.1} parent=0 // pred_check
    _
  $region91: #{topdown_forward.1} parent=0 // pred_check_branch
    %142 = sbr.rel (0) target = $region93
  $region92: #{topdown_forward.1} parent=0 // pred_region
    _
  $region93: #{topdown_forward.1} parent=0 // pred_fallthru
    _
  // Predicated region
  $region94: #{topdown_forward.1} parent=0 // pred_check
    _
  $region95: #{topdown_forward.1} parent=0 // pred_check_branch
    %144 = sbr.rel (0) target = $region97
  $region96: #{topdown_forward.1} parent=0 // pred_region
    _
  $region97: #{topdown_forward.1} parent=0 // pred_fallthru
    _
  // Predicated region
  $region98: #{topdown_forward.1} parent=0 // pred_check
    _
  $region99: #{topdown_forward.1} parent=0 // pred_check_branch
    %146 = sbr.rel (0) target = $region101
  $region100: #{topdown_forward.1} parent=0 // pred_region
    _
  $region101: #{topdown_forward.1} parent=0 // pred_fallthru
    _
  // Predicated region
  $region102: #{topdown_forward.1} parent=0 // pred_check
    _
  $region103: #{topdown_forward.1} parent=0 // pred_check_branch
    %148 = sbr.rel (0) target = $region105
  $region104: #{topdown_forward.1} parent=0 // pred_region
    _
  $region105: #{topdown_forward.1} parent=0 // pred_fallthru
    _
  // Predicated region
  $region106: #{topdown_forward.1} parent=0 // pred_check
    _
  $region107: #{topdown_forward.1} parent=0 // pred_check_branch
    %150 = sbr.rel (0) target = $region109
  $region108: #{topdown_forward.1} parent=0 // pred_region
    _
  $region109: #{topdown_forward.1} parent=0 // pred_fallthru
    _
  // Predicated region
  $region110: #{topdown_forward.1} parent=0 // pred_check
    _
  $region111: #{topdown_forward.1} parent=0 // pred_check_branch
    %152 = sbr.rel (0) target = $region113
  $region112: #{topdown_forward.1} parent=0 // pred_region
    _
  $region113: #{topdown_forward.1} parent=0 // pred_fallthru
    _
  // Predicated region
  $region114: #{topdown_forward.1} parent=0 // pred_check
    _
  $region115: #{topdown_forward.1} parent=0 // pred_check_branch
    %154 = sbr.rel (0) target = $region117
  $region116: #{topdown_forward.1} parent=0 // pred_region
    _
  $region117: #{topdown_forward.1} parent=0 // pred_fallthru
    _
  // Predicated region
  $region118: #{topdown_forward.1} parent=0 // pred_check
    _
  $region119: #{topdown_forward.1} parent=0 // pred_check_branch
    %156 = sbr.rel (0) target = $region121
  $region120: #{topdown_forward.1} parent=0 // pred_region
    _
  $region121: #{topdown_forward.1} parent=0 // pred_fallthru
    _
  // Predicated region
  $region122: #{topdown_forward.1} parent=0 // pred_check
    _
  $region123: #{topdown_forward.1} parent=0 // pred_check_branch
    %158 = sbr.rel (0) target = $region125
  $region124: #{topdown_forward.1} parent=0 // pred_region
    _
  $region125: #{topdown_forward.1} parent=0 // pred_fallthru
    _
  // Predicated region
  $region126: #{topdown_forward.1} parent=0 // pred_check
    _
  $region127: #{topdown_forward.1} parent=0 // pred_check_branch
    %160 = sbr.rel (0) target = $region129
  $region128: #{topdown_forward.1} parent=0 // pred_region
    _
  $region129: #{topdown_forward.1} parent=0 // pred_fallthru
    _
  // Predicated region
  $region130: #{topdown_forward.1} parent=0 // pred_check
    _
  $region131: #{topdown_forward.1} parent=0 // pred_check_branch
    %162 = sbr.rel (0) target = $region133
  $region132: #{topdown_forward.1} parent=0 // pred_region
    _
  $region133: #{topdown_forward.1} parent=0 // pred_fallthru
    _
  // Predicated region
  $region134: #{topdown_forward.1} parent=0 // pred_check
    _
  $region135: #{topdown_forward.1} parent=0 // pred_check_branch
    %164 = sbr.rel (0) target = $region137
  $region136: #{topdown_forward.1} parent=0 // pred_region
    _
  $region137: #{topdown_forward.1} parent=0 // pred_fallthru
    _
  // Predicated region
  $region138: #{topdown_forward.1} parent=0 // pred_check
    _
  $region139: #{topdown_forward.1} parent=0 // pred_check_branch
    %166 = sbr.rel (0) target = $region141
  $region140: #{topdown_forward.1} parent=0 // pred_region
    _
  $region141: #{topdown_forward.1} parent=0 // pred_fallthru
    _
  // Predicated region
  $region142: #{topdown_forward.1} parent=0 // pred_check
    _
  $region143: #{topdown_forward.1} parent=0 // pred_check_branch
    %168 = sbr.rel (0) target = $region145
  $region144: #{topdown_forward.1} parent=0 // pred_region
    _
  $region145: #{topdown_forward.1} parent=0 // pred_fallthru
    _
  // Predicated region
  $region146: #{topdown_forward.1} parent=0 // pred_check
    _
  $region147: #{topdown_forward.1} parent=0 // pred_check_branch
    %170 = sbr.rel (0) target = $region149
  $region148: #{topdown_forward.1} parent=0 // pred_region
    _
  $region149: #{topdown_forward.1} parent=0 // pred_fallthru
    _
  // Predicated region
  $region150: #{topdown_forward.1} parent=0 // pred_check
    _
  $region151: #{topdown_forward.1} parent=0 // pred_check_branch
    %172 = sbr.rel (0) target = $region153
  $region152: #{topdown_forward.1} parent=0 // pred_region
    _
  $region153: #{topdown_forward.1} parent=0 // pred_fallthru
    _
  // Predicated region
  $region154: #{topdown_forward.1} parent=0 // pred_check
    _
  $region155: #{topdown_forward.1} parent=0 // pred_check_branch
    %174 = sbr.rel (0) target = $region157
  $region156: #{topdown_forward.1} parent=0 // pred_region
    _
  $region157: #{topdown_forward.1} parent=0 // pred_fallthru
    _
  // Predicated region
  $region158: #{topdown_forward.1} parent=0 // pred_check
    _
  $region159: #{topdown_forward.1} parent=0 // pred_check_branch
    %176 = sbr.rel (0) target = $region161
  $region160: #{topdown_forward.1} parent=0 // pred_region
    _
  $region161: #{topdown_forward.1} parent=0 // pred_fallthru
    _
  // Predicated region
  $region162: #{topdown_forward.1} parent=0 // pred_check
    _
  $region163: #{topdown_forward.1} parent=0 // pred_check_branch
    %178 = sbr.rel (0) target = $region165
  $region164: #{topdown_forward.1} parent=0 // pred_region
    _
  $region165: #{topdown_forward.1} parent=0 // pred_fallthru
    _
  // Predicated region
  $region166: #{topdown_forward.1} parent=0 // pred_check
    _
  $region167: #{topdown_forward.1} parent=0 // pred_check_branch
    %180 = sbr.rel (0) target = $region169
  $region168: #{topdown_forward.1} parent=0 // pred_region
    _
  $region169: #{topdown_forward.1} parent=0 // pred_fallthru
    _
  // Predicated region
  $region170: #{topdown_forward.1} parent=0 // pred_check
    _
  $region171: #{topdown_forward.1} parent=0 // pred_check_branch
    %182 = sbr.rel (0) target = $region173
  $region172: #{topdown_forward.1} parent=0 // pred_region
    _
  $region173: #{topdown_forward.1} parent=0 // pred_fallthru
    _
  // Predicated region
  $region174: #{topdown_forward.1} parent=0 // pred_check
    _
  $region175: #{topdown_forward.1} parent=0 // pred_check_branch
    %184 = sbr.rel (0) target = $region177
  $region176: #{topdown_forward.1} parent=0 // pred_region
    _
  $region177: #{topdown_forward.1} parent=0 // pred_fallthru
    _
  %v185 = vld [vmem:[%s1] sm:$0xff]
  %v186 = vld [vmem:[%s3] sm:$0xff]
  %v187 = vld [vmem:[%s5] sm:$0xff]
  %v188 = vld [vmem:[%s9] sm:$0xff]
  %v189 = vld [vmem:[%s11] sm:$0xff]
  %v190 = vld [vmem:[%s11 + $0x8] sm:$0xff]
  %v191 = vld [vmem:[%s11 + $0x10] sm:$0xff]
  %v192 = vld [vmem:[%s11 + $0x18] sm:$0xff]
  %vm193 = vcmask 261120
  %v195 = vsel %vm193, %v186, 0
  %197 = vmatpush.msra.mxu0 0.0
  %198 = vmatpush.msra.mxu0 0.0
  %199 = vmatpush.msra.mxu0 0.0
  %200 = vmatpush.msra.mxu0 0.0
  %201 = vmatpush.msra.mxu0 0.0
  %202 = vmatpush.msra.mxu0 0.0
  %203 = vmatpush.msra.mxu0 0.0
  %204 = vmatpush.msra.mxu0 0.0
  %205 = vmatpush.msra.mxu0 0.0
  %206 = vmatpush.msra.mxu0 0.0
  %207 = vmatpush.msra.mxu0 0.0
  %208 = vmatpush.msra.mxu0 0.0
  %209 = vmatpush.msra.mxu0 %v192
  %210 = vmatpush.msra.mxu0 %v191
  %211 = vmatpush.msra.mxu0 %v190
  %212 = vmatpush.msra.mxu0 %v189
  %213 = vmatmul.f32.gmra.mxu0 %v195
  %v214 = vpop.f32.mrf.mxu0
  %v215 = vadd.f32 0.0, %v214
  %216 = vdwg.mxu0
  %vm217 = vcmask 64512
  %v219 = vsel %vm217, %v185, 0
  %221 = vmatpush.msra.mxu0 0.0
  %222 = vmatpush.msra.mxu0 0.0
  %223 = vmatpush.msra.mxu0 0.0
  %224 = vmatpush.msra.mxu0 0.0
  %225 = vmatpush.msra.mxu0 0.0
  %226 = vmatpush.msra.mxu0 0.0
  %227 = vmatpush.msra.mxu0 0.0
  %228 = vmatpush.msra.mxu0 0.0
  %229 = vmatpush.msra.mxu0 0.0
  %230 = vmatpush.msra.mxu0 0.0
  %231 = vmatpush.msra.mxu0 0.0
  %232 = vmatpush.msra.mxu0 0.0
  %233 = vmatpush.msra.mxu0 0.0
  %234 = vmatpush.msra.mxu0 0.0
  %235 = vmatpush.msra.mxu0 0.0
  %236 = vmatpush.msra.mxu0 %v188
  %237 = vmatmul.f32.gmra.mxu0 %v219
  %v238 = vpop.f32.mrf.mxu0
  %v239 = vadd.f32 %v215, %v238
  %240 = vdwg.mxu0
  %v241 = vld [vmem:[%s13] sm:$0xff]
  %v242 = vld [vmem:[%s13 + $0x8] sm:$0xff]
  %vm243 = vcmask 130048
  %v245 = vsel %vm243, %v187, 0
  %247 = vmatpush.msra.mxu0 0.0
  %248 = vmatpush.msra.mxu0 0.0
  %249 = vmatpush.msra.mxu0 0.0
  %250 = vmatpush.msra.mxu0 0.0
  %251 = vmatpush.msra.mxu0 0.0
  %252 = vmatpush.msra.mxu0 0.0
  %253 = vmatpush.msra.mxu0 0.0
  %254 = vmatpush.msra.mxu0 0.0
  %255 = vmatpush.msra.mxu0 0.0
  %256 = vmatpush.msra.mxu0 0.0
  %257 = vmatpush.msra.mxu0 0.0
  %258 = vmatpush.msra.mxu0 0.0
  %259 = vmatpush.msra.mxu0 0.0
  %260 = vmatpush.msra.mxu0 0.0
  %261 = vmatpush.msra.mxu0 %v242
  %262 = vmatpush.msra.mxu0 %v241
  %263 = vmatmul.f32.gmra.mxu0 %v245
  %v264 = vpop.f32.mrf.mxu0
  %v265 = vadd.f32 0.0, %v264
  %266 = vdwg.mxu0
  %v267 = vadd.f32 %v239, %v265
  %v268 = vld [vmem:[%s15] sm:$0x1]
  %v270 = vperm.slane %v268, 0
  %v272 = vadd.f32 %v267, %v270
  %v273 = vxor.u32 %v272, 2147483648
  %v274 = vmul.f32 %v273, 1.442695
  %v275 = vpow.pop %v274
  %v276 = vadd.f32 %v275, 1.0
  %v277 = vrcp.pop %v276
  %v278 = vmul.f32 %v276, %v277
  %v279 = vsub.f32 1.0, %v278
  %v280 = vmul.f32 %v277, %v279
  %v281 = vadd.f32 %v277, %v280
  %vm282 = vweird.f32 %v276
  %vm283 = vweird.f32 %v277
  %vm284 = vmor %vm282, %vm283
  %v285 = vsel %vm284, %v277, %v281
  %v286 = vand.u32 2147483647, %v276
  %vm287 = vcmp.eq.f32.partialorder %v286, 8.507059e+37
  %v288 = vand.u32 %v276, 2147483648
  %v289 = vor.u32 1.1754944e-38, %v288
  %v290 = vsel %vm287, %v289, %v285
  %v291 = vmul.f32 1.0, %v290
  %v292 = vmul.f32 %v272, %v291
  %v293 = vld [vmem:[%s17] sm:$0xff]
  %v294 = vld [vmem:[%s17 + $0x8] sm:$0xff]
  %v295 = vld [vmem:[%s17 + $0x10] sm:$0xff]
  %v296 = vld [vmem:[%s17 + $0x18] sm:$0xff]
  %v297 = vld [vmem:[%s19] sm:$0xff]
  %v298 = vld [vmem:[%s19 + $0x8] sm:$0xff]
  %299 = vmatpush.msra.mxu0 0.0
  %300 = vmatpush.msra.mxu0 0.0
  %301 = vmatpush.msra.mxu0 0.0
  %302 = vmatpush.msra.mxu0 0.0
  %303 = vmatpush.msra.mxu0 0.0
  %304 = vmatpush.msra.mxu0 0.0
  %305 = vmatpush.msra.mxu0 0.0
  %306 = vmatpush.msra.mxu0 0.0
  %307 = vmatpush.msra.mxu0 0.0
  %308 = vmatpush.msra.mxu0 0.0
  %309 = vmatpush.msra.mxu0 0.0
  %310 = vmatpush.msra.mxu0 0.0
  %311 = vmatpush.msra.mxu0 0.0
  %312 = vmatpush.msra.mxu0 0.0
  %313 = vmatpush.msra.mxu0 %v298
  %314 = vmatpush.msra.mxu0 %v297
  %315 = vmatmul.f32.gmra.mxu0 %v245
  %v316 = vpop.f32.mrf.mxu0
  %v317 = vadd.f32 0.0, %v316
  %318 = vdwg.mxu0
  %v320 = vsel %vm193, %v292, 0
  %322 = vmatpush.msra.mxu0 0.0
  %323 = vmatpush.msra.mxu0 0.0
  %324 = vmatpush.msra.mxu0 0.0
  %325 = vmatpush.msra.mxu0 0.0
  %326 = vmatpush.msra.mxu0 0.0
  %327 = vmatpush.msra.mxu0 0.0
  %328 = vmatpush.msra.mxu0 0.0
  %329 = vmatpush.msra.mxu0 0.0
  %330 = vmatpush.msra.mxu0 0.0
  %331 = vmatpush.msra.mxu0 0.0
  %332 = vmatpush.msra.mxu0 0.0
  %333 = vmatpush.msra.mxu0 0.0
  %334 = vmatpush.msra.mxu0 %v296
  %335 = vmatpush.msra.mxu0 %v295
  %336 = vmatpush.msra.mxu0 %v294
  %337 = vmatpush.msra.mxu0 %v293
  %338 = vmatmul.f32.gmra.mxu0 %v320
  %v339 = vpop.f32.mrf.mxu0
  %v340 = vadd.f32 %v317, %v339
  %341 = vdwg.mxu0
  %v342 = vld [vmem:[%s21] sm:$0x1]
  %v344 = vperm.slane %v342, 0
  %v346 = vadd.f32 %v340, %v344
  %v347 = vxor.u32 %v346, 2147483648
  %v348 = vmul.f32 %v347, 1.442695
  %v349 = vpow.pop %v348
  %v350 = vadd.f32 %v349, 1.0
  %v351 = vrcp.pop %v350
  %v352 = vmul.f32 %v350, %v351
  %v353 = vsub.f32 1.0, %v352
  %v354 = vmul.f32 %v351, %v353
  %v355 = vadd.f32 %v351, %v354
  %vm356 = vweird.f32 %v350
  %vm357 = vweird.f32 %v351
  %vm358 = vmor %vm356, %vm357
  %v359 = vsel %vm358, %v351, %v355
  %v360 = vand.u32 2147483647, %v350
  %vm361 = vcmp.eq.f32.partialorder %v360, 8.507059e+37
  %v362 = vand.u32 %v350, 2147483648
  %v363 = vor.u32 1.1754944e-38, %v362
  %v364 = vsel %vm361, %v363, %v359
  %v365 = vmul.f32 1.0, %v364
  %v366 = vmul.f32 %v346, %v365
  %v367 = vld [vmem:[%s23] sm:$0xff]
  %v368 = vld [vmem:[%s23 + $0x8] sm:$0xff]
  %v369 = vld [vmem:[%s23 + $0x10] sm:$0xff]
  %v370 = vld [vmem:[%s23 + $0x18] sm:$0xff]
  %v371 = vld [vmem:[%s25] sm:$0xff]
  %v372 = vld [vmem:[%s25 + $0x8] sm:$0xff]
  %373 = vmatpush.msra.mxu0 0.0
  %374 = vmatpush.msra.mxu0 0.0
  %375 = vmatpush.msra.mxu0 0.0
  %376 = vmatpush.msra.mxu0 0.0
  %377 = vmatpush.msra.mxu0 0.0
  %378 = vmatpush.msra.mxu0 0.0
  %379 = vmatpush.msra.mxu0 0.0
  %380 = vmatpush.msra.mxu0 0.0
  %381 = vmatpush.msra.mxu0 0.0
  %382 = vmatpush.msra.mxu0 0.0
  %383 = vmatpush.msra.mxu0 0.0
  %384 = vmatpush.msra.mxu0 0.0
  %385 = vmatpush.msra.mxu0 0.0
  %386 = vmatpush.msra.mxu0 0.0
  %387 = vmatpush.msra.mxu0 %v372
  %388 = vmatpush.msra.mxu0 %v371
  %389 = vmatmul.f32.gmra.mxu0 %v245
  %v390 = vpop.f32.mrf.mxu0
  %v391 = vadd.f32 0.0, %v390
  %392 = vdwg.mxu0
  %v394 = vsel %vm193, %v366, 0
  %396 = vmatpush.msra.mxu0 0.0
  %397 = vmatpush.msra.mxu0 0.0
  %398 = vmatpush.msra.mxu0 0.0
  %399 = vmatpush.msra.mxu0 0.0
  %400 = vmatpush.msra.mxu0 0.0
  %401 = vmatpush.msra.mxu0 0.0
  %402 = vmatpush.msra.mxu0 0.0
  %403 = vmatpush.msra.mxu0 0.0
  %404 = vmatpush.msra.mxu0 0.0
  %405 = vmatpush.msra.mxu0 0.0
  %406 = vmatpush.msra.mxu0 0.0
  %407 = vmatpush.msra.mxu0 0.0
  %408 = vmatpush.msra.mxu0 %v370
  %409 = vmatpush.msra.mxu0 %v369
  %410 = vmatpush.msra.mxu0 %v368
  %411 = vmatpush.msra.mxu0 %v367
  %412 = vmatmul.f32.gmra.mxu0 %v394
  %v413 = vpop.f32.mrf.mxu0
  %v414 = vadd.f32 %v391, %v413
  %415 = vdwg.mxu0
  %v416 = vld [vmem:[%s27] sm:$0x1]
  %v418 = vperm.slane %v416, 0
  %v420 = vadd.f32 %v414, %v418
  %v421 = vxor.u32 %v420, 2147483648
  %v422 = vmul.f32 %v421, 1.442695
  %v423 = vpow.pop %v422
  %v424 = vadd.f32 %v423, 1.0
  %v425 = vrcp.pop %v424
  %v426 = vmul.f32 %v424, %v425
  %v427 = vsub.f32 1.0, %v426
  %v428 = vmul.f32 %v425, %v427
  %v429 = vadd.f32 %v425, %v428
  %vm430 = vweird.f32 %v424
  %vm431 = vweird.f32 %v425
  %vm432 = vmor %vm430, %vm431
  %v433 = vsel %vm432, %v425, %v429
  %v434 = vand.u32 2147483647, %v424
  %vm435 = vcmp.eq.f32.partialorder %v434, 8.507059e+37
  %v436 = vand.u32 %v424, 2147483648
  %v437 = vor.u32 1.1754944e-38, %v436
  %v438 = vsel %vm435, %v437, %v433
  %v439 = vmul.f32 1.0, %v438
  %v440 = vmul.f32 %v420, %v439
  %v441 = vld [vmem:[%s29] sm:$0xff]
  %v442 = vld [vmem:[%s29 + $0x8] sm:$0xff]
  %v443 = vld [vmem:[%s29 + $0x10] sm:$0xff]
  %v444 = vld [vmem:[%s29 + $0x18] sm:$0xff]
  %v445 = vld [vmem:[%s31] sm:$0xff]
  %v446 = vld [vmem:[%s31 + $0x8] sm:$0xff]
  %447 = vmatpush.msra.mxu0 0.0
  %448 = vmatpush.msra.mxu0 0.0
  %449 = vmatpush.msra.mxu0 0.0
  %450 = vmatpush.msra.mxu0 0.0
  %451 = vmatpush.msra.mxu0 0.0
  %452 = vmatpush.msra.mxu0 0.0
  %453 = vmatpush.msra.mxu0 0.0
  %454 = vmatpush.msra.mxu0 0.0
  %455 = vmatpush.msra.mxu0 0.0
  %456 = vmatpush.msra.mxu0 0.0
  %457 = vmatpush.msra.mxu0 0.0
  %458 = vmatpush.msra.mxu0 0.0
  %459 = vmatpush.msra.mxu0 0.0
  %460 = vmatpush.msra.mxu0 0.0
  %461 = vmatpush.msra.mxu0 %v446
  %462 = vmatpush.msra.mxu0 %v445
  %463 = vmatmul.f32.gmra.mxu0 %v245
  %v464 = vpop.f32.mrf.mxu0
  %v465 = vadd.f32 0.0, %v464
  %466 = vdwg.mxu0
  %467 = vmatpush.msra.mxu0 0.0
  %468 = vmatpush.msra.mxu0 0.0
  %469 = vmatpush.msra.mxu0 0.0
  %470 = vmatpush.msra.mxu0 0.0
  %471 = vmatpush.msra.mxu0 0.0
  %472 = vmatpush.msra.mxu0 0.0
  %473 = vmatpush.msra.mxu0 0.0
  %474 = vmatpush.msra.mxu0 0.0
  %475 = vmatpush.msra.mxu0 0.0
  %476 = vmatpush.msra.mxu0 0.0
  %477 = vmatpush.msra.mxu0 0.0
  %478 = vmatpush.msra.mxu0 0.0
  %479 = vmatpush.msra.mxu0 %v444
  %480 = vmatpush.msra.mxu0 %v443
  %481 = vmatpush.msra.mxu0 %v442
  %482 = vmatpush.msra.mxu0 %v441
  %483 = vmatmul.f32.gmra.mxu0 %v394
  %v484 = vpop.f32.mrf.mxu0
  %v485 = vadd.f32 %v465, %v484
  %486 = vdwg.mxu0
  %v487 = vld [vmem:[%s33] sm:$0x1]
  %v489 = vperm.slane %v487, 0
  %v491 = vadd.f32 %v485, %v489
  %v492 = vxor.u32 %v491, 2147483648
  %v493 = vmul.f32 %v492, 1.442695
  %v494 = vpow.pop %v493
  %v495 = vadd.f32 %v494, 1.0
  %v496 = vrcp.pop %v495
  %v497 = vmul.f32 %v495, %v496
  %v498 = vsub.f32 1.0, %v497
  %v499 = vmul.f32 %v496, %v498
  %v500 = vadd.f32 %v496, %v499
  %vm501 = vweird.f32 %v495
  %vm502 = vweird.f32 %v496
  %vm503 = vmor %vm501, %vm502
  %v504 = vsel %vm503, %v496, %v500
  %v505 = vand.u32 2147483647, %v495
  %vm506 = vcmp.eq.f32.partialorder %v505, 8.507059e+37
  %v507 = vand.u32 %v495, 2147483648
  %v508 = vor.u32 1.1754944e-38, %v507
  %v509 = vsel %vm506, %v508, %v504
  %v510 = vmul.f32 1.0, %v509
  %v511 = vmul.f32 %v491, %v510
  %v512 = vld [vmem:[%s35] sm:$0xff]
  %v513 = vld [vmem:[%s37] sm:$0xff]
  %v514 = vld [vmem:[%s37 + $0x8] sm:$0xff]
  %515 = vmatpush.msra.mxu0 0.0
  %516 = vmatpush.msra.mxu0 0.0
  %517 = vmatpush.msra.mxu0 0.0
  %518 = vmatpush.msra.mxu0 0.0
  %519 = vmatpush.msra.mxu0 0.0
  %520 = vmatpush.msra.mxu0 0.0
  %521 = vmatpush.msra.mxu0 0.0
  %522 = vmatpush.msra.mxu0 0.0
  %523 = vmatpush.msra.mxu0 0.0
  %524 = vmatpush.msra.mxu0 0.0
  %525 = vmatpush.msra.mxu0 0.0
  %526 = vmatpush.msra.mxu0 0.0
  %527 = vmatpush.msra.mxu0 0.0
  %528 = vmatpush.msra.mxu0 0.0
  %529 = vmatpush.msra.mxu0 %v514
  %530 = vmatpush.msra.mxu0 %v513
  %531 = vmatmul.f32.gmra.mxu0 %v245
  %v532 = vpop.f32.mrf.mxu0
  %v533 = vadd.f32 0.0, %v532
  %534 = vdwg.mxu0
  %535 = vmatpush.msra.mxu0 0.0
  %536 = vmatpush.msra.mxu0 0.0
  %537 = vmatpush.msra.mxu0 0.0
  %538 = vmatpush.msra.mxu0 0.0
  %539 = vmatpush.msra.mxu0 0.0
  %540 = vmatpush.msra.mxu0 0.0
  %541 = vmatpush.msra.mxu0 0.0
  %542 = vmatpush.msra.mxu0 0.0
  %543 = vmatpush.msra.mxu0 0.0
  %544 = vmatpush.msra.mxu0 0.0
  %545 = vmatpush.msra.mxu0 0.0
  %546 = vmatpush.msra.mxu0 0.0
  %547 = vmatpush.msra.mxu0 0.0
  %548 = vmatpush.msra.mxu0 0.0
  %549 = vmatpush.msra.mxu0 0.0
  %550 = vmatpush.msra.mxu0 %v512
  %551 = vmatmul.f32.gmra.mxu0 %v219
  %v552 = vpop.f32.mrf.mxu0
  %v553 = vadd.f32 %v533, %v552
  %554 = vdwg.mxu0
  %v555 = vld [vmem:[%s39] sm:$0x1]
  %v557 = vperm.slane %v555, 0
  %v559 = vadd.f32 %v553, %v557
  %v560 = vxor.u32 %v559, 2147483648
  %v561 = vmul.f32 %v560, 1.442695
  %v562 = vpow.pop %v561
  %v563 = vadd.f32 %v562, 1.0
  %v564 = vrcp.pop %v563
  %v565 = vmul.f32 %v563, %v564
  %v566 = vsub.f32 1.0, %v565
  %v567 = vmul.f32 %v564, %v566
  %v568 = vadd.f32 %v564, %v567
  %vm569 = vweird.f32 %v563
  %vm570 = vweird.f32 %v564
  %vm571 = vmor %vm569, %vm570
  %v572 = vsel %vm571, %v564, %v568
  %v573 = vand.u32 2147483647, %v563
  %vm574 = vcmp.eq.f32.partialorder %v573, 8.507059e+37
  %v575 = vand.u32 %v563, 2147483648
  %v576 = vor.u32 1.1754944e-38, %v575
  %v577 = vsel %vm574, %v576, %v572
  %v578 = vmul.f32 1.0, %v577
  %v579 = vmul.f32 %v559, %v578
  %v580 = vld [vmem:[%s41] sm:$0xff]
  %v581 = vld [vmem:[%s41 + $0x8] sm:$0xff]
  %v582 = vld [vmem:[%s41 + $0x10] sm:$0xff]
  %v583 = vld [vmem:[%s41 + $0x18] sm:$0xff]
  %v584 = vld [vmem:[%s43] sm:$0xff]
  %v585 = vld [vmem:[%s43 + $0x8] sm:$0xff]
  %586 = vmatpush.msra.mxu0 0.0
  %587 = vmatpush.msra.mxu0 0.0
  %588 = vmatpush.msra.mxu0 0.0
  %589 = vmatpush.msra.mxu0 0.0
  %590 = vmatpush.msra.mxu0 0.0
  %591 = vmatpush.msra.mxu0 0.0
  %592 = vmatpush.msra.mxu0 0.0
  %593 = vmatpush.msra.mxu0 0.0
  %594 = vmatpush.msra.mxu0 0.0
  %595 = vmatpush.msra.mxu0 0.0
  %596 = vmatpush.msra.mxu0 0.0
  %597 = vmatpush.msra.mxu0 0.0
  %598 = vmatpush.msra.mxu0 0.0
  %599 = vmatpush.msra.mxu0 0.0
  %600 = vmatpush.msra.mxu0 %v585
  %601 = vmatpush.msra.mxu0 %v584
  %602 = vmatmul.f32.gmra.mxu0 %v245
  %v603 = vpop.f32.mrf.mxu0
  %v604 = vadd.f32 0.0, %v603
  %605 = vdwg.mxu0
  %v607 = vsel %vm193, %v579, 0
  %609 = vmatpush.msra.mxu0 0.0
  %610 = vmatpush.msra.mxu0 0.0
  %611 = vmatpush.msra.mxu0 0.0
  %612 = vmatpush.msra.mxu0 0.0
  %613 = vmatpush.msra.mxu0 0.0
  %614 = vmatpush.msra.mxu0 0.0
  %615 = vmatpush.msra.mxu0 0.0
  %616 = vmatpush.msra.mxu0 0.0
  %617 = vmatpush.msra.mxu0 0.0
  %618 = vmatpush.msra.mxu0 0.0
  %619 = vmatpush.msra.mxu0 0.0
  %620 = vmatpush.msra.mxu0 0.0
  %621 = vmatpush.msra.mxu0 %v583
  %622 = vmatpush.msra.mxu0 %v582
  %623 = vmatpush.msra.mxu0 %v581
  %624 = vmatpush.msra.mxu0 %v580
  %625 = vmatmul.f32.gmra.mxu0 %v607
  %v626 = vpop.f32.mrf.mxu0
  %v627 = vadd.f32 %v604, %v626
  %628 = vdwg.mxu0
  %v629 = vld [vmem:[%s45] sm:$0x1]
  %v631 = vperm.slane %v629, 0
  %v633 = vadd.f32 %v627, %v631
  %v634 = vxor.u32 %v633, 2147483648
  %v635 = vmul.f32 %v634, 1.442695
  %v636 = vpow.pop %v635
  %v637 = vadd.f32 %v636, 1.0
  %v638 = vrcp.pop %v637
  %v639 = vmul.f32 %v637, %v638
  %v640 = vsub.f32 1.0, %v639
  %v641 = vmul.f32 %v638, %v640
  %v642 = vadd.f32 %v638, %v641
  %vm643 = vweird.f32 %v637
  %vm644 = vweird.f32 %v638
  %vm645 = vmor %vm643, %vm644
  %v646 = vsel %vm645, %v638, %v642
  %v647 = vand.u32 2147483647, %v637
  %vm648 = vcmp.eq.f32.partialorder %v647, 8.507059e+37
  %v649 = vand.u32 %v637, 2147483648
  %v650 = vor.u32 1.1754944e-38, %v649
  %v651 = vsel %vm648, %v650, %v646
  %v652 = vmul.f32 1.0, %v651
  %v653 = vmul.f32 %v633, %v652
  %v654 = vld [vmem:[%s47] sm:$0xff]
  %v655 = vld [vmem:[%s47 + $0x8] sm:$0xff]
  %v656 = vld [vmem:[%s47 + $0x10] sm:$0xff]
  %v657 = vld [vmem:[%s47 + $0x18] sm:$0xff]
  %v658 = vld [vmem:[%s49] sm:$0xff]
  %v659 = vld [vmem:[%s49 + $0x8] sm:$0xff]
  %660 = vmatpush.msra.mxu0 0.0
  %661 = vmatpush.msra.mxu0 0.0
  %662 = vmatpush.msra.mxu0 0.0
  %663 = vmatpush.msra.mxu0 0.0
  %664 = vmatpush.msra.mxu0 0.0
  %665 = vmatpush.msra.mxu0 0.0
  %666 = vmatpush.msra.mxu0 0.0
  %667 = vmatpush.msra.mxu0 0.0
  %668 = vmatpush.msra.mxu0 0.0
  %669 = vmatpush.msra.mxu0 0.0
  %670 = vmatpush.msra.mxu0 0.0
  %671 = vmatpush.msra.mxu0 0.0
  %672 = vmatpush.msra.mxu0 0.0
  %673 = vmatpush.msra.mxu0 0.0
  %674 = vmatpush.msra.mxu0 %v659
  %675 = vmatpush.msra.mxu0 %v658
  %676 = vmatmul.f32.gmra.mxu0 %v245
  %v677 = vpop.f32.mrf.mxu0
  %v678 = vadd.f32 0.0, %v677
  %679 = vdwg.mxu0
  %v681 = vsel %vm193, %v653, 0
  %683 = vmatpush.msra.mxu0 0.0
  %684 = vmatpush.msra.mxu0 0.0
  %685 = vmatpush.msra.mxu0 0.0
  %686 = vmatpush.msra.mxu0 0.0
  %687 = vmatpush.msra.mxu0 0.0
  %688 = vmatpush.msra.mxu0 0.0
  %689 = vmatpush.msra.mxu0 0.0
  %690 = vmatpush.msra.mxu0 0.0
  %691 = vmatpush.msra.mxu0 0.0
  %692 = vmatpush.msra.mxu0 0.0
  %693 = vmatpush.msra.mxu0 0.0
  %694 = vmatpush.msra.mxu0 0.0
  %695 = vmatpush.msra.mxu0 %v657
  %696 = vmatpush.msra.mxu0 %v656
  %697 = vmatpush.msra.mxu0 %v655
  %698 = vmatpush.msra.mxu0 %v654
  %699 = vmatmul.f32.gmra.mxu0 %v681
  %v700 = vpop.f32.mrf.mxu0
  %v701 = vadd.f32 %v678, %v700
  %702 = vdwg.mxu0
  %v703 = vld [vmem:[%s51] sm:$0x1]
  %v705 = vperm.slane %v703, 0
  %v707 = vadd.f32 %v701, %v705
  %v708 = vxor.u32 %v707, 2147483648
  %v709 = vmul.f32 %v708, 1.442695
  %v710 = vpow.pop %v709
  %v711 = vadd.f32 %v710, 1.0
  %v712 = vrcp.pop %v711
  %v713 = vmul.f32 %v711, %v712
  %v714 = vsub.f32 1.0, %v713
  %v715 = vmul.f32 %v712, %v714
  %v716 = vadd.f32 %v712, %v715
  %vm717 = vweird.f32 %v711
  %vm718 = vweird.f32 %v712
  %vm719 = vmor %vm717, %vm718
  %v720 = vsel %vm719, %v712, %v716
  %v721 = vand.u32 2147483647, %v711
  %vm722 = vcmp.eq.f32.partialorder %v721, 8.507059e+37
  %v723 = vand.u32 %v711, 2147483648
  %v724 = vor.u32 1.1754944e-38, %v723
  %v725 = vsel %vm722, %v724, %v720
  %v726 = vmul.f32 1.0, %v725
  %v727 = vmul.f32 %v707, %v726
  %v728 = vld [vmem:[%s53] sm:$0xff]
  %v729 = vld [vmem:[%s53 + $0x8] sm:$0xff]
  %v730 = vld [vmem:[%s53 + $0x10] sm:$0xff]
  %v731 = vld [vmem:[%s53 + $0x18] sm:$0xff]
  %v732 = vld [vmem:[%s55] sm:$0xff]
  %v733 = vld [vmem:[%s55 + $0x8] sm:$0xff]
  %734 = vmatpush.msra.mxu0 0.0
  %735 = vmatpush.msra.mxu0 0.0
  %736 = vmatpush.msra.mxu0 0.0
  %737 = vmatpush.msra.mxu0 0.0
  %738 = vmatpush.msra.mxu0 0.0
  %739 = vmatpush.msra.mxu0 0.0
  %740 = vmatpush.msra.mxu0 0.0
  %741 = vmatpush.msra.mxu0 0.0
  %742 = vmatpush.msra.mxu0 0.0
  %743 = vmatpush.msra.mxu0 0.0
  %744 = vmatpush.msra.mxu0 0.0
  %745 = vmatpush.msra.mxu0 0.0
  %746 = vmatpush.msra.mxu0 0.0
  %747 = vmatpush.msra.mxu0 0.0
  %748 = vmatpush.msra.mxu0 %v733
  %749 = vmatpush.msra.mxu0 %v732
  %750 = vmatmul.f32.gmra.mxu0 %v245
  %v751 = vpop.f32.mrf.mxu0
  %v752 = vadd.f32 0.0, %v751
  %753 = vdwg.mxu0
  %754 = vmatpush.msra.mxu0 0.0
  %755 = vmatpush.msra.mxu0 0.0
  %756 = vmatpush.msra.mxu0 0.0
  %757 = vmatpush.msra.mxu0 0.0
  %758 = vmatpush.msra.mxu0 0.0
  %759 = vmatpush.msra.mxu0 0.0
  %760 = vmatpush.msra.mxu0 0.0
  %761 = vmatpush.msra.mxu0 0.0
  %762 = vmatpush.msra.mxu0 0.0
  %763 = vmatpush.msra.mxu0 0.0
  %764 = vmatpush.msra.mxu0 0.0
  %765 = vmatpush.msra.mxu0 0.0
  %766 = vmatpush.msra.mxu0 %v731
  %767 = vmatpush.msra.mxu0 %v730
  %768 = vmatpush.msra.mxu0 %v729
  %769 = vmatpush.msra.mxu0 %v728
  %770 = vmatmul.f32.gmra.mxu0 %v681
  %v771 = vpop.f32.mrf.mxu0
  %v772 = vadd.f32 %v752, %v771
  %773 = vdwg.mxu0
  %v774 = vld [vmem:[%s57] sm:$0x1]
  %v776 = vperm.slane %v774, 0
  %v778 = vadd.f32 %v772, %v776
  %v779 = vxor.u32 %v778, 2147483648
  %v780 = vmul.f32 %v779, 1.442695
  %v781 = vpow.pop %v780
  %v782 = vadd.f32 %v781, 1.0
  %v783 = vrcp.pop %v782
  %v784 = vmul.f32 %v782, %v783
  %v785 = vsub.f32 1.0, %v784
  %v786 = vmul.f32 %v783, %v785
  %v787 = vadd.f32 %v783, %v786
  %vm788 = vweird.f32 %v782
  %vm789 = vweird.f32 %v783
  %vm790 = vmor %vm788, %vm789
  %v791 = vsel %vm790, %v783, %v787
  %v792 = vand.u32 2147483647, %v782
  %vm793 = vcmp.eq.f32.partialorder %v792, 8.507059e+37
  %v794 = vand.u32 %v782, 2147483648
  %v795 = vor.u32 1.1754944e-38, %v794
  %v796 = vsel %vm793, %v795, %v791
  %v797 = vmul.f32 1.0, %v796
  %v798 = vmul.f32 %v778, %v797
  %v799 = vld [vmem:[%s59] sm:$0xff]
  %v800 = vld [vmem:[%s59 + $0x8] sm:$0xff]
  %v801 = vld [vmem:[%s59 + $0x10] sm:$0xff]
  %v802 = vld [vmem:[%s59 + $0x18] sm:$0xff]
  %v803 = vld [vmem:[%s61] sm:$0xff]
  %v804 = vld [vmem:[%s61 + $0x8] sm:$0xff]
  %805 = vmatpush.msra.mxu0 0.0
  %806 = vmatpush.msra.mxu0 0.0
  %807 = vmatpush.msra.mxu0 0.0
  %808 = vmatpush.msra.mxu0 0.0
  %809 = vmatpush.msra.mxu0 0.0
  %810 = vmatpush.msra.mxu0 0.0
  %811 = vmatpush.msra.mxu0 0.0
  %812 = vmatpush.msra.mxu0 0.0
  %813 = vmatpush.msra.mxu0 0.0
  %814 = vmatpush.msra.mxu0 0.0
  %815 = vmatpush.msra.mxu0 0.0
  %816 = vmatpush.msra.mxu0 0.0
  %817 = vmatpush.msra.mxu0 0.0
  %818 = vmatpush.msra.mxu0 0.0
  %819 = vmatpush.msra.mxu0 %v804
  %820 = vmatpush.msra.mxu0 %v803
  %821 = vmatmul.f32.gmra.mxu0 %v245
  %v822 = vpop.f32.mrf.mxu0
  %v823 = vadd.f32 0.0, %v822
  %824 = vdwg.mxu0
  %825 = vmatpush.msra.mxu0 0.0
  %826 = vmatpush.msra.mxu0 0.0
  %827 = vmatpush.msra.mxu0 0.0
  %828 = vmatpush.msra.mxu0 0.0
  %829 = vmatpush.msra.mxu0 0.0
  %830 = vmatpush.msra.mxu0 0.0
  %831 = vmatpush.msra.mxu0 0.0
  %832 = vmatpush.msra.mxu0 0.0
  %833 = vmatpush.msra.mxu0 0.0
  %834 = vmatpush.msra.mxu0 0.0
  %835 = vmatpush.msra.mxu0 0.0
  %836 = vmatpush.msra.mxu0 0.0
  %837 = vmatpush.msra.mxu0 %v802
  %838 = vmatpush.msra.mxu0 %v801
  %839 = vmatpush.msra.mxu0 %v800
  %840 = vmatpush.msra.mxu0 %v799
  %841 = vmatmul.f32.gmra.mxu0 %v681
  %v842 = vpop.f32.mrf.mxu0
  %v843 = vadd.f32 %v823, %v842
  %844 = vdwg.mxu0
  %v845 = vld [vmem:[%s63] sm:$0x1]
  %v847 = vperm.slane %v845, 0
  %v849 = vadd.f32 %v843, %v847
  %v850 = vxor.u32 %v849, 2147483648
  %v851 = vmul.f32 %v850, 1.442695
  %v852 = vpow.pop %v851
  %v853 = vadd.f32 %v852, 1.0
  %v854 = vrcp.pop %v853
  %v855 = vmul.f32 %v853, %v854
  %v856 = vsub.f32 1.0, %v855
  %v857 = vmul.f32 %v854, %v856
  %v858 = vadd.f32 %v854, %v857
  %vm859 = vweird.f32 %v853
  %vm860 = vweird.f32 %v854
  %vm861 = vmor %vm859, %vm860
  %v862 = vsel %vm861, %v854, %v858
  %v863 = vand.u32 2147483647, %v853
  %vm864 = vcmp.eq.f32.partialorder %v863, 8.507059e+37
  %v865 = vand.u32 %v853, 2147483648
  %v866 = vor.u32 1.1754944e-38, %v865
  %v867 = vsel %vm864, %v866, %v862
  %v868 = vmul.f32 1.0, %v867
  %v869 = vmul.f32 %v849, %v868
  %v870 = vmul.f32 %v511, 0.5
  %v871 = vmul.f32 %v870, 1.442695
  %v872 = vpow.pop %v871
  %v873 = vld [vmem:[%s7] sm:$0xff]
  %v874 = vmul.f32 %v872, %v873
  %v875 = vadd.f32 %v440, %v874
  %v876 = vld [vmem:[%s65] sm:$0xff]
  %v877 = vld [vmem:[%s67] sm:$0xff]
  %v878 = vld [vmem:[%s67 + $0x8] sm:$0xff]
  %879 = vmatpush.msra.mxu0 0.0
  %880 = vmatpush.msra.mxu0 0.0
  %881 = vmatpush.msra.mxu0 0.0
  %882 = vmatpush.msra.mxu0 0.0
  %883 = vmatpush.msra.mxu0 0.0
  %884 = vmatpush.msra.mxu0 0.0
  %885 = vmatpush.msra.mxu0 0.0
  %886 = vmatpush.msra.mxu0 0.0
  %887 = vmatpush.msra.mxu0 0.0
  %888 = vmatpush.msra.mxu0 0.0
  %889 = vmatpush.msra.mxu0 0.0
  %890 = vmatpush.msra.mxu0 0.0
  %891 = vmatpush.msra.mxu0 0.0
  %892 = vmatpush.msra.mxu0 0.0
  %893 = vmatpush.msra.mxu0 %v878
  %894 = vmatpush.msra.mxu0 %v877
  %895 = vmatmul.f32.gmra.mxu0 %v245
  %v896 = vpop.f32.mrf.mxu0
  %v897 = vadd.f32 0.0, %v896
  %898 = vdwg.mxu0
  %v900 = vsel %vm217, %v875, 0
  %902 = vmatpush.msra.mxu0 0.0
  %903 = vmatpush.msra.mxu0 0.0
  %904 = vmatpush.msra.mxu0 0.0
  %905 = vmatpush.msra.mxu0 0.0
  %906 = vmatpush.msra.mxu0 0.0
  %907 = vmatpush.msra.mxu0 0.0
  %908 = vmatpush.msra.mxu0 0.0
  %909 = vmatpush.msra.mxu0 0.0
  %910 = vmatpush.msra.mxu0 0.0
  %911 = vmatpush.msra.mxu0 0.0
  %912 = vmatpush.msra.mxu0 0.0
  %913 = vmatpush.msra.mxu0 0.0
  %914 = vmatpush.msra.mxu0 0.0
  %915 = vmatpush.msra.mxu0 0.0
  %916 = vmatpush.msra.mxu0 0.0
  %917 = vmatpush.msra.mxu0 %v876
  %918 = vmatmul.f32.gmra.mxu0 %v900
  %v919 = vpop.f32.mrf.mxu0
  %v920 = vadd.f32 %v897, %v919
  %921 = vdwg.mxu0
  %v922 = vld [vmem:[%s69] sm:$0x1]
  %v924 = vperm.slane %v922, 0
  %v926 = vadd.f32 %v920, %v924
  %v927 = vadd.f32 %v185, %v727
  %v928 = vadd.f32 %v927, %v926
  %v929 = vld [vmem:[%s71] sm:$0xff]
  %v930 = vld [vmem:[%s73] sm:$0xff]
  %v931 = vld [vmem:[%s73 + $0x8] sm:$0xff]
  %932 = vmatpush.msra.mxu0 0.0
  %933 = vmatpush.msra.mxu0 0.0
  %934 = vmatpush.msra.mxu0 0.0
  %935 = vmatpush.msra.mxu0 0.0
  %936 = vmatpush.msra.mxu0 0.0
  %937 = vmatpush.msra.mxu0 0.0
  %938 = vmatpush.msra.mxu0 0.0
  %939 = vmatpush.msra.mxu0 0.0
  %940 = vmatpush.msra.mxu0 0.0
  %941 = vmatpush.msra.mxu0 0.0
  %942 = vmatpush.msra.mxu0 0.0
  %943 = vmatpush.msra.mxu0 0.0
  %944 = vmatpush.msra.mxu0 0.0
  %945 = vmatpush.msra.mxu0 0.0
  %946 = vmatpush.msra.mxu0 %v931
  %947 = vmatpush.msra.mxu0 %v930
  %948 = vmatmul.f32.gmra.mxu0 %v245
  %v949 = vpop.f32.mrf.mxu0
  %v950 = vadd.f32 0.0, %v949
  %951 = vdwg.mxu0
  %v953 = vsel %vm217, %v928, 0
  %955 = vmatpush.msra.mxu0 0.0
  %956 = vmatpush.msra.mxu0 0.0
  %957 = vmatpush.msra.mxu0 0.0
  %958 = vmatpush.msra.mxu0 0.0
  %959 = vmatpush.msra.mxu0 0.0
  %960 = vmatpush.msra.mxu0 0.0
  %961 = vmatpush.msra.mxu0 0.0
  %962 = vmatpush.msra.mxu0 0.0
  %963 = vmatpush.msra.mxu0 0.0
  %964 = vmatpush.msra.mxu0 0.0
  %965 = vmatpush.msra.mxu0 0.0
  %966 = vmatpush.msra.mxu0 0.0
  %967 = vmatpush.msra.mxu0 0.0
  %968 = vmatpush.msra.mxu0 0.0
  %969 = vmatpush.msra.mxu0 0.0
  %970 = vmatpush.msra.mxu0 %v929
  %971 = vmatmul.f32.gmra.mxu0 %v953
  %v972 = vpop.f32.mrf.mxu0
  %v973 = vadd.f32 %v950, %v972
  %974 = vdwg.mxu0
  %v975 = vld [vmem:[%s75] sm:$0x1]
  %v977 = vperm.slane %v975, 0
  %v979 = vadd.f32 %v973, %v977
  %v980 = vxor.u32 %v979, 2147483648
  %v981 = vmul.f32 %v980, 1.442695
  %v982 = vpow.pop %v981
  %v983 = vadd.f32 %v982, 1.0
  %v984 = vrcp.pop %v983
  %v985 = vmul.f32 %v983, %v984
  %v986 = vsub.f32 1.0, %v985
  %v987 = vmul.f32 %v984, %v986
  %v988 = vadd.f32 %v984, %v987
  %vm989 = vweird.f32 %v983
  %vm990 = vweird.f32 %v984
  %vm991 = vmor %vm989, %vm990
  %v992 = vsel %vm991, %v984, %v988
  %v993 = vand.u32 2147483647, %v983
  %vm994 = vcmp.eq.f32.partialorder %v993, 8.507059e+37
  %v995 = vand.u32 %v983, 2147483648
  %v996 = vor.u32 1.1754944e-38, %v995
  %v997 = vsel %vm994, %v996, %v992
  %v998 = vmul.f32 1.0, %v997
  %v999 = vmul.f32 %v979, %v998
  %v1000 = vld [vmem:[%s77] sm:$0xff]
  %v1001 = vld [vmem:[%s77 + $0x8] sm:$0xff]
  %v1002 = vld [vmem:[%s77 + $0x10] sm:$0xff]
  %v1003 = vld [vmem:[%s77 + $0x18] sm:$0xff]
  %v1004 = vld [vmem:[%s79] sm:$0xff]
  %v1005 = vld [vmem:[%s79 + $0x8] sm:$0xff]
  %1006 = vmatpush.msra.mxu0 0.0
  %1007 = vmatpush.msra.mxu0 0.0
  %1008 = vmatpush.msra.mxu0 0.0
  %1009 = vmatpush.msra.mxu0 0.0
  %1010 = vmatpush.msra.mxu0 0.0
  %1011 = vmatpush.msra.mxu0 0.0
  %1012 = vmatpush.msra.mxu0 0.0
  %1013 = vmatpush.msra.mxu0 0.0
  %1014 = vmatpush.msra.mxu0 0.0
  %1015 = vmatpush.msra.mxu0 0.0
  %1016 = vmatpush.msra.mxu0 0.0
  %1017 = vmatpush.msra.mxu0 0.0
  %1018 = vmatpush.msra.mxu0 0.0
  %1019 = vmatpush.msra.mxu0 0.0
  %1020 = vmatpush.msra.mxu0 %v1005
  %1021 = vmatpush.msra.mxu0 %v1004
  %1022 = vmatmul.f32.gmra.mxu0 %v245
  %v1023 = vpop.f32.mrf.mxu0
  %v1024 = vadd.f32 0.0, %v1023
  %1025 = vdwg.mxu0
  %v1027 = vsel %vm193, %v999, 0
  %1029 = vmatpush.msra.mxu0 0.0
  %1030 = vmatpush.msra.mxu0 0.0
  %1031 = vmatpush.msra.mxu0 0.0
  %1032 = vmatpush.msra.mxu0 0.0
  %1033 = vmatpush.msra.mxu0 0.0
  %1034 = vmatpush.msra.mxu0 0.0
  %1035 = vmatpush.msra.mxu0 0.0
  %1036 = vmatpush.msra.mxu0 0.0
  %1037 = vmatpush.msra.mxu0 0.0
  %1038 = vmatpush.msra.mxu0 0.0
  %1039 = vmatpush.msra.mxu0 0.0
  %1040 = vmatpush.msra.mxu0 0.0
  %1041 = vmatpush.msra.mxu0 %v1003
  %1042 = vmatpush.msra.mxu0 %v1002
  %1043 = vmatpush.msra.mxu0 %v1001
  %1044 = vmatpush.msra.mxu0 %v1000
  %1045 = vmatmul.f32.gmra.mxu0 %v1027
  %v1046 = vpop.f32.mrf.mxu0
  %v1047 = vadd.f32 %v1024, %v1046
  %1048 = vdwg.mxu0
  %v1049 = vld [vmem:[%s81] sm:$0x1]
  %v1051 = vperm.slane %v1049, 0
  %v1053 = vadd.f32 %v1047, %v1051
  %v1054 = vxor.u32 %v1053, 2147483648
  %v1055 = vmul.f32 %v1054, 1.442695
  %v1056 = vpow.pop %v1055
  %v1057 = vadd.f32 %v1056, 1.0
  %v1058 = vrcp.pop %v1057
  %v1059 = vmul.f32 %v1057, %v1058
  %v1060 = vsub.f32 1.0, %v1059
  %v1061 = vmul.f32 %v1058, %v1060
  %v1062 = vadd.f32 %v1058, %v1061
  %vm1063 = vweird.f32 %v1057
  %vm1064 = vweird.f32 %v1058
  %vm1065 = vmor %vm1063, %vm1064
  %v1066 = vsel %vm1065, %v1058, %v1062
  %v1067 = vand.u32 2147483647, %v1057
  %vm1068 = vcmp.eq.f32.partialorder %v1067, 8.507059e+37
  %v1069 = vand.u32 %v1057, 2147483648
  %v1070 = vor.u32 1.1754944e-38, %v1069
  %v1071 = vsel %vm1068, %v1070, %v1066
  %v1072 = vmul.f32 1.0, %v1071
  %v1073 = vmul.f32 %v1053, %v1072
  %v1074 = vld [vmem:[%s83] sm:$0xff]
  %v1075 = vld [vmem:[%s83 + $0x8] sm:$0xff]
  %v1076 = vld [vmem:[%s83 + $0x10] sm:$0xff]
  %v1077 = vld [vmem:[%s83 + $0x18] sm:$0xff]
  %v1078 = vld [vmem:[%s85] sm:$0xff]
  %v1079 = vld [vmem:[%s85 + $0x8] sm:$0xff]
  %1080 = vmatpush.msra.mxu0 0.0
  %1081 = vmatpush.msra.mxu0 0.0
  %1082 = vmatpush.msra.mxu0 0.0
  %1083 = vmatpush.msra.mxu0 0.0
  %1084 = vmatpush.msra.mxu0 0.0
  %1085 = vmatpush.msra.mxu0 0.0
  %1086 = vmatpush.msra.mxu0 0.0
  %1087 = vmatpush.msra.mxu0 0.0
  %1088 = vmatpush.msra.mxu0 0.0
  %1089 = vmatpush.msra.mxu0 0.0
  %1090 = vmatpush.msra.mxu0 0.0
  %1091 = vmatpush.msra.mxu0 0.0
  %1092 = vmatpush.msra.mxu0 0.0
  %1093 = vmatpush.msra.mxu0 0.0
  %1094 = vmatpush.msra.mxu0 %v1079
  %1095 = vmatpush.msra.mxu0 %v1078
  %1096 = vmatmul.f32.gmra.mxu0 %v245
  %v1097 = vpop.f32.mrf.mxu0
  %v1098 = vadd.f32 0.0, %v1097
  %1099 = vdwg.mxu0
  %v1101 = vsel %vm193, %v1073, 0
  %1103 = vmatpush.msra.mxu0 0.0
  %1104 = vmatpush.msra.mxu0 0.0
  %1105 = vmatpush.msra.mxu0 0.0
  %1106 = vmatpush.msra.mxu0 0.0
  %1107 = vmatpush.msra.mxu0 0.0
  %1108 = vmatpush.msra.mxu0 0.0
  %1109 = vmatpush.msra.mxu0 0.0
  %1110 = vmatpush.msra.mxu0 0.0
  %1111 = vmatpush.msra.mxu0 0.0
  %1112 = vmatpush.msra.mxu0 0.0
  %1113 = vmatpush.msra.mxu0 0.0
  %1114 = vmatpush.msra.mxu0 0.0
  %1115 = vmatpush.msra.mxu0 %v1077
  %1116 = vmatpush.msra.mxu0 %v1076
  %1117 = vmatpush.msra.mxu0 %v1075
  %1118 = vmatpush.msra.mxu0 %v1074
  %1119 = vmatmul.f32.gmra.mxu0 %v1101
  %v1120 = vpop.f32.mrf.mxu0
  %v1121 = vadd.f32 %v1098, %v1120
  %1122 = vdwg.mxu0
  %v1123 = vld [vmem:[%s87] sm:$0x1]
  %v1125 = vperm.slane %v1123, 0
  %v1127 = vadd.f32 %v1121, %v1125
  %v1128 = vxor.u32 %v1127, 2147483648
  %v1129 = vmul.f32 %v1128, 1.442695
  %v1130 = vpow.pop %v1129
  %v1131 = vadd.f32 %v1130, 1.0
  %v1132 = vrcp.pop %v1131
  %v1133 = vmul.f32 %v1131, %v1132
  %v1134 = vsub.f32 1.0, %v1133
  %v1135 = vmul.f32 %v1132, %v1134
  %v1136 = vadd.f32 %v1132, %v1135
  %vm1137 = vweird.f32 %v1131
  %vm1138 = vweird.f32 %v1132
  %vm1139 = vmor %vm1137, %vm1138
  %v1140 = vsel %vm1139, %v1132, %v1136
  %v1141 = vand.u32 2147483647, %v1131
  %vm1142 = vcmp.eq.f32.partialorder %v1141, 8.507059e+37
  %v1143 = vand.u32 %v1131, 2147483648
  %v1144 = vor.u32 1.1754944e-38, %v1143
  %v1145 = vsel %vm1142, %v1144, %v1140
  %v1146 = vmul.f32 1.0, %v1145
  %v1147 = vmul.f32 %v1127, %v1146
  %v1148 = vadd.f32 %v1147, %v928
  %1149 = vst.msk [vmem:[%s89] sm:$0xff] %vm217, %v1148
  %v1150 = vsub.f32 %v869, %v511
  %v1151 = vmul.f32 %v511, 1.442695
  %v1152 = vpow.pop %v1151
  %v1153 = vsub.f32 %v440, %v798
  %v1154 = vmul.f32 %v1153, %v1153
  %v1155 = vadd.f32 %v1152, %v1154
  %v1156 = vsub.f32 0.0, %v869
  %v1157 = vmul.f32 %v1156, 1.442695
  %v1158 = vpow.pop %v1157
  %v1159 = vmul.f32 %v1155, %v1158
  %v1160 = vadd.f32 %v1150, %v1159
  %v1161 = vsub.f32 %v1160, 1.0
  %v1162 = vmul.f32 %v1161, 0.5
  %1163 = vst.msk [vmem:[%s91] sm:$0xff] %vm217, %v1162
  // Predicated region
  $region178: #{topdown_forward.1} parent=0 // pred_check
    _
  $region179: #{topdown_forward.1} parent=0 // pred_check_branch
    %1165 = sbr.rel (0) target = $region181
  $region180: #{topdown_forward.1} parent=0 // pred_region
    _
  $region181: #{topdown_forward.1} parent=0 // pred_fallthru
    _
  // Predicated region
  $region182: #{topdown_forward.1} parent=0 // pred_check
    _
  $region183: #{topdown_forward.1} parent=0 // pred_check_branch
    %1167 = sbr.rel (0) target = $region185
  $region184: #{topdown_forward.1} parent=0 // pred_region
    _
  $region185: #{topdown_forward.1} parent=0 // pred_fallthru
    _
  // Predicated region
  $region186: #{topdown_forward.1} parent=0 // pred_check
    _
  $region187: #{topdown_forward.1} parent=0 // pred_check_branch
    %1169 = sbr.rel (0) target = $region189
  $region188: #{topdown_forward.1} parent=0 // pred_region
    _
  $region189: #{topdown_forward.1} parent=0 // pred_fallthru
    _
  // Predicated region
  $region190: #{topdown_forward.1} parent=0 // pred_check
    _
  $region191: #{topdown_forward.1} parent=0 // pred_check_branch
    %1171 = sbr.rel (0) target = $region193
  $region192: #{topdown_forward.1} parent=0 // pred_region
    _
  $region193: #{topdown_forward.1} parent=0 // pred_fallthru
    _

</llo_original>
